<compile_context>
chip_gen: v7x
topology: tpu7x:2x2x1
jax: 0.10.0
libtpu: 0.0.40
codegen_flags: <defaults>
</compile_context>

<pallas_src>
import functools

import jax
import jax.numpy as jnp
from jax import lax
from jax.experimental import pallas as pl
from jax.experimental.pallas import tpu as pltpu


# --------------------------------------------------------------------------
# Helpers: generation gating + block selection.
# --------------------------------------------------------------------------
def _round_up(x, m):
    return ((x + m - 1) // m) * m


def _device_kind():
    try:
        return jax.devices()[0].device_kind.lower()
    except Exception:
        return ""


def _vmem_budget_bytes(kind):
    if "v7" in kind or "7x" in kind:
        return 48 << 20      # v7x: 64 MiB/TC physical -> leave compiler headroom
    if "v6" in kind or "v5" in kind:
        return 100 << 20     # v5e/v6e: 128 MiB physical VMEM, single TC
    return 64 << 20          # unknown / older generations: conservative


def _block_vmem_bytes(bc, tb, e, sp, weight_bytes):
    f32 = 4
    io = 2 * f32 * bc * tb * (e + e)               # x + out blocks, double-buffered
    st = 2 * f32 * bc * sp * 2                     # state0 + final-state blocks
    scr = f32 * bc * sp + 3 * f32 * tb * bc * sp   # carried state + gate/si/states
    live = 2 * f32 * bc * tb * (2 * e + 2 * sp)    # in-kernel values + relayouts (fudge)
    return io + st + scr + 2 * weight_bytes + live


def _pick_blocks(B, T, E, Sp, weight_bytes, kind, budget):
    # Whole batch per block on single-TC chips (v5e/v6e).  On v7x, split the
    # batch across the two TensorCores only when the half-batch keeps the state
    # block sublane-aligned (multiple of 8).
    if ("v7" in kind or "7x" in kind) and B % 2 == 0 and (B // 2) % 8 == 0:
        bc = B // 2
    else:
        bc = B
    cands = [tb for tb in (512, 256, 128, 64, 32, 16, 8) if T % tb == 0] or [T]
    for tb in cands:   # largest time block whose working set fits the VMEM budget
        if _block_vmem_bytes(bc, tb, E, Sp, weight_bytes) <= int(0.8 * budget):
            return bc, tb
    return bc, cands[-1]


def _swap_leading(x3):
    # (a, b, c) -> (b, a, c); einshape is the lane-layout-aware relayout on TPU
    # (rides the otherwise-idle XLU / copy path, last dim stays on lanes).
    return pltpu.einshape("abc->bac", x3)


# --------------------------------------------------------------------------
# Fused kernel: projections + time-blocked recurrence + output matmul.
# --------------------------------------------------------------------------
def _thunder_kernel(
    x_ref,          # (Bc, Tb, E)   input block
    state0_ref,     # (Bc, Sp)      initial state (lane-padded)
    w_in_e_ref,     # (E, E)
    w_in_s_ref,     # (E, Sp)
    b_in_e_ref,     # (1, E)
    b_in_s_ref,     # (1, Sp)
    w_g_e_ref,      # (E, Sp)
    w_g_s_ref,      # (Sp, Sp)
    b_g_ref,        # (1, Sp)
    w_out_e_ref,    # (E, E)
    w_out_s_ref,    # (Sp, E)
    b_out_ref,      # (1, E)
    out_ref,        # (Bc, Tb, E)   output block
    state_out_ref,  # (Bc, Sp)      final state (written at last time step)
    state_scr,      # (Bc, Sp)      carried state across the (arbitrary) time axis
    gate_scr,       # (Tb, Bc, Sp)  time-major staging
    si_scr,         # (Tb, Bc, Sp)  time-major staging
    states_scr,     # (Tb, Bc, Sp)  per-step states of this block
    *,
    unroll,
):
    t_idx = pl.program_id(1)
    bc, tb, e = x_ref.shape
    sp = state_scr.shape[-1]

    # The carried state is only valid because the time axis is the innermost,
    # in-order ("arbitrary") grid axis; the batch axis is the outer "parallel" one.
    @pl.when(t_idx == 0)
    def _init_state():
        state_scr[...] = state0_ref[...].astype(jnp.float32)

    # ---- state-independent projections for the whole block (MXU, M = Bc*Tb) ----
    x = x_ref[...].astype(jnp.float32).reshape(bc * tb, e)
    embed = (jnp.dot(x, w_in_e_ref[...], preferred_element_type=jnp.float32)
             + b_in_e_ref[...])
    state_in = (jnp.dot(x, w_in_s_ref[...], preferred_element_type=jnp.float32)
                + b_in_s_ref[...])
    gate = jax.nn.sigmoid(
        jnp.dot(embed, w_g_e_ref[...], preferred_element_type=jnp.float32)
        + jnp.dot(state_in, w_g_s_ref[...], preferred_element_type=jnp.float32)
        + b_g_ref[...])
    out_embed = (jnp.dot(embed, w_out_e_ref[...], preferred_element_type=jnp.float32)
                 + b_out_ref[...])

    # ---- stage gate/state_in TIME-major: each scan step then touches one dense
    #      (Bc, Sp) tile instead of Bc masked single-sublane rows ---------------
    gate_scr[...] = _swap_leading(gate.reshape(bc, tb, sp))
    si_scr[...] = _swap_leading(state_in.reshape(bc, tb, sp))

    # ---- sequential gate recurrence (elementwise VPU chain, bounded unroll) ----
    def step(i, s):
        g = gate_scr[i]                 # (Bc, Sp) dense load
        si = si_scr[i]
        s = si + g * (s - si)           # == g * s + (1 - g) * si
        states_scr[i] = s               # (Bc, Sp) dense store
        return s

    s_final = lax.fori_loop(0, tb, step, state_scr[...], unroll=unroll)
    state_scr[...] = s_final

    # ---- state contribution: ONE (Bc*Tb, Sp) @ (Sp, E) matmul ------------------
    states = _swap_leading(states_scr[...]).reshape(bc * tb, sp)
    out = out_embed + jnp.dot(states, w_out_s_ref[...],
                              preferred_element_type=jnp.float32)
    out_ref[...] = out.reshape(bc, tb, e).astype(out_ref.dtype)

    @pl.when(t_idx == pl.num_programs(1) - 1)
    def _write_final_state():
        state_out_ref[...] = s_final.astype(state_out_ref.dtype)


def _thunder_pallas(x, state0_p, wp, *, bc, tb, sp, vmem_limit, unroll):
    B, T, E = x.shape
    grid = (B // bc, T // tb)

    # Kernel-argument order (must match _thunder_kernel).
    weights = [wp["w_in_e"], wp["w_in_s"], wp["b_in_e"], wp["b_in_s"],
               wp["w_g_e"], wp["w_g_s"], wp["b_g"],
               wp["w_out_e"], wp["w_out_s"], wp["b_out"]]
    weight_bytes = 4 * sum(int(w.size) for w in weights)

    # Weight index_maps are constant, so Pallas only DMAs them on the first grid
    # step per core.  For large E on v7x, store them in bf16 and/or single-buffer
    # them (pipeline_mode=pl.Buffered(1)) to halve resident weight VMEM.
    def const_spec(w):
        return pl.BlockSpec(w.shape, lambda bi, ti: (0, 0))

    in_specs = (
        [pl.BlockSpec((bc, tb, E), lambda bi, ti: (bi, ti, 0)),   # x
         pl.BlockSpec((bc, sp), lambda bi, ti: (bi, 0))]          # state0
        + [const_spec(w) for w in weights]
    )
    out_specs = (
        pl.BlockSpec((bc, tb, E), lambda bi, ti: (bi, ti, 0)),    # output sequence
        pl.BlockSpec((bc, sp), lambda bi, ti: (bi, 0)),           # final state
    )
    out_shape = (
        jax.ShapeDtypeStruct((B, T, E), x.dtype),
        jax.ShapeDtypeStruct((B, sp), x.dtype),
    )

    flops = 2 * B * T * (2 * E * E + 3 * E * sp + sp * sp) + 8 * B * T * sp
    bytes_accessed = 4 * (2 * B * T * E + 2 * B * sp) + weight_bytes

    return pl.pallas_call(
        functools.partial(_thunder_kernel, unroll=unroll),
        out_shape=out_shape,
        grid=grid,
        in_specs=in_specs,
        out_specs=out_specs,
        scratch_shapes=[
            pltpu.VMEM((bc, sp), jnp.float32),       # carried state
            pltpu.VMEM((tb, bc, sp), jnp.float32),   # gate   (time-major)
            pltpu.VMEM((tb, bc, sp), jnp.float32),   # state_in (time-major)
            pltpu.VMEM((tb, bc, sp), jnp.float32),   # states (time-major)
        ],
        compiler_params=pltpu.CompilerParams(
            dimension_semantics=("parallel", "arbitrary"),
            vmem_limit_bytes=int(vmem_limit),
        ),
        cost_estimate=pl.CostEstimate(
            flops=int(flops),
            transcendentals=int(B * T * sp),
            bytes_accessed=int(bytes_accessed),
        ),
    )(x, state0_p, *weights)


# --------------------------------------------------------------------------
# Public forward pass.
# --------------------------------------------------------------------------
@jax.jit
def thunder_core_forward(x, params, state0=None):
    """x: (B, T, E) float32. Returns (output_seq (B, T, E), final_state (B, S))."""
    B, T, E = x.shape
    S = params["b_g"].shape[-1]
    Sp = _round_up(max(S, 1), 128)           # lane-align the state dimension
    pad_s = Sp - S

    if state0 is None:
        state0 = jnp.zeros((B, S), x.dtype)

    # Zero-padding S is exact: padded state_in/b's are 0, padded gate lanes see
    # zero inputs, padded W_out_s rows are 0 => padded lanes never contribute.
    f32 = jnp.float32
    wp = {
        "w_in_e": params["w_in_e"].astype(f32),
        "b_in_e": params["b_in_e"].astype(f32),
        "w_out_e": params["w_out_e"].astype(f32),
        "b_out": params["b_out"].astype(f32),
        "w_in_s": jnp.pad(params["w_in_s"].astype(f32), ((0, 0), (0, pad_s))),
        "b_in_s": jnp.pad(params["b_in_s"].astype(f32), ((0, 0), (0, pad_s))),
        "w_g_e": jnp.pad(params["w_g_e"].astype(f32), ((0, 0), (0, pad_s))),
        "w_g_s": jnp.pad(params["w_g_s"].astype(f32), ((0, pad_s), (0, pad_s))),
        "b_g": jnp.pad(params["b_g"].astype(f32), ((0, 0), (0, pad_s))),
        "w_out_s": jnp.pad(params["w_out_s"].astype(f32), ((0, pad_s), (0, 0))),
    }
    state0_p = jnp.pad(state0.astype(f32), ((0, 0), (0, pad_s)))

    kind = _device_kind()
    budget = _vmem_budget_bytes(kind)
    weight_bytes = 4 * sum(int(w.size) for w in wp.values())
    bc, tb = _pick_blocks(B, T, E, Sp, weight_bytes, kind, budget)
    assert B % bc == 0 and T % tb == 0
    vmem_limit = min(budget,
                     max(_block_vmem_bytes(bc, tb, E, Sp, weight_bytes) + (16 << 20),
                         32 << 20))
    unroll = max(1, min(8, tb))

    out, state_out_p = _thunder_pallas(
        x, state0_p, wp, bc=bc, tb=tb, sp=Sp, vmem_limit=vmem_limit, unroll=unroll)

    return out, state_out_p[:, :S].astype(x.dtype)


# --------------------------------------------------------------------------
# Parameter init (nn.Linear-style) and pure-JAX reference.
# --------------------------------------------------------------------------
def init_params(key, embed_dim, state_dim):
    """nn.Linear-style init (U(-1/sqrt(in), 1/sqrt(in))), weights stored (in, out)
    and pre-split so the kernel never concats/splits along the lane axis."""
    E, S = embed_dim, state_dim
    ks = jax.random.split(key, 6)

    def lin(kw, kb, fan_in, fan_out):
        bound = 1.0 / jnp.sqrt(fan_in)
        w = jax.random.uniform(kw, (fan_in, fan_out), jnp.float32, -bound, bound)
        b = jax.random.uniform(kb, (1, fan_out), jnp.float32, -bound, bound)
        return w, b

    w_in, b_in = lin(ks[0], ks[1], E, E + S)      # input_proj
    w_g, b_g = lin(ks[2], ks[3], E + S, S)        # gate
    w_out, b_out = lin(ks[4], ks[5], E + S, E)    # output_proj

    return {
        "w_in_e": w_in[:, :E], "w_in_s": w_in[:, E:],
        "b_in_e": b_in[:, :E], "b_in_s": b_in[:, E:],
        "w_g_e": w_g[:E, :], "w_g_s": w_g[E:, :], "b_g": b_g,
        "w_out_e": w_out[:E, :], "w_out_s": w_out[E:, :], "b_out": b_out,
    }


def thunder_core_reference(x, params, state0=None):
    """Pure-JAX loop matching the PyTorch module step for step."""
    B, T, E = x.shape
    S = params["b_g"].shape[-1]
    state = jnp.zeros((B, S), x.dtype) if state0 is None else state0
    outs = []
    for t in range(T):
        x_t = x[:, t, :]
        embed = x_t @ params["w_in_e"] + params["b_in_e"][0]
        state_in = x_t @ params["w_in_s"] + params["b_in_s"][0]
        gate = jax.nn.sigmoid(
            embed @ params["w_g_e"] + state_in @ params["w_g_s"] + params["b_g"][0])
        state = gate * state + (1.0 - gate) * state_in
        out = embed @ params["w_out_e"] + state @ params["w_out_s"] + params["b_out"][0]
        outs.append(out)
    return jnp.stack(outs, axis=1), state


if __name__ == "__main__":
    B, T, E, S = 2, 8, 32, 8

    key = jax.random.PRNGKey(0)
    k_x, k_p = jax.random.split(key)
    x = jax.random.normal(k_x, (B, T, E), jnp.float32)
    params = init_params(k_p, E, S)

    out_seq, final_state = jax.block_until_ready(thunder_core_forward(x, params))
    ref_seq, ref_state = thunder_core_reference(x, params)

    assert out_seq.shape == (B, T, E) and final_state.shape == (B, S)
    assert jnp.allclose(out_seq, ref_seq, atol=1e-5, rtol=1e-5)
    assert jnp.allclose(final_state, ref_state, atol=1e-5, rtol=1e-5)

    print("KERNEL_OK")
</pallas_src>

<mosaic_0001>
module attributes {stable_mosaic.version = 11 : i64} {
  func.func @_thunder_kernel(%arg0: i32, %arg1: i32, %arg2: memref<2x8x32xf32, #tpu.memory_space<vmem>>, %arg3: memref<2x128xf32, #tpu.memory_space<vmem>>, %arg4: memref<32x32xf32, #tpu.memory_space<vmem>>, %arg5: memref<32x128xf32, #tpu.memory_space<vmem>>, %arg6: memref<1x32xf32, #tpu.memory_space<vmem>>, %arg7: memref<1x128xf32, #tpu.memory_space<vmem>>, %arg8: memref<32x128xf32, #tpu.memory_space<vmem>>, %arg9: memref<128x128xf32, #tpu.memory_space<vmem>>, %arg10: memref<1x128xf32, #tpu.memory_space<vmem>>, %arg11: memref<32x32xf32, #tpu.memory_space<vmem>>, %arg12: memref<128x32xf32, #tpu.memory_space<vmem>>, %arg13: memref<1x32xf32, #tpu.memory_space<vmem>>, %arg14: memref<2x8x32xf32, #tpu.memory_space<vmem>>, %arg15: memref<2x128xf32, #tpu.memory_space<vmem>>, %arg16: memref<2x128xf32, #tpu.memory_space<vmem>>, %arg17: memref<8x2x128xf32, #tpu.memory_space<vmem>>, %arg18: memref<8x2x128xf32, #tpu.memory_space<vmem>>, %arg19: memref<8x2x128xf32, #tpu.memory_space<vmem>>) attributes {dimension_semantics = [#tpu.dimension_semantics<parallel>, #tpu.dimension_semantics<arbitrary>], iteration_bounds = array<i64: 1, 1>, scalar_prefetch = 0 : i64, scratch_operands = 4 : i64, tpu.core_type = #tpu.core_type<tc>, window_params = [{transform_indices = @transform_0, window_bounds = array<i64: 2, 8, 32>}, {transform_indices = @transform_1, window_bounds = array<i64: 2, 128>}, {pipeline_mode = #tpu.pipeline_mode<synchronous>, transform_indices = @transform_2, window_bounds = array<i64: 32, 32>}, {pipeline_mode = #tpu.pipeline_mode<synchronous>, transform_indices = @transform_3, window_bounds = array<i64: 32, 128>}, {pipeline_mode = #tpu.pipeline_mode<synchronous>, transform_indices = @transform_4, window_bounds = array<i64: 1, 32>}, {pipeline_mode = #tpu.pipeline_mode<synchronous>, transform_indices = @transform_5, window_bounds = array<i64: 1, 128>}, {pipeline_mode = #tpu.pipeline_mode<synchronous>, transform_indices = @transform_6, window_bounds = array<i64: 32, 128>}, {pipeline_mode = #tpu.pipeline_mode<synchronous>, transform_indices = @transform_7, window_bounds = array<i64: 128, 128>}, {pipeline_mode = #tpu.pipeline_mode<synchronous>, transform_indices = @transform_8, window_bounds = array<i64: 1, 128>}, {pipeline_mode = #tpu.pipeline_mode<synchronous>, transform_indices = @transform_9, window_bounds = array<i64: 32, 32>}, {pipeline_mode = #tpu.pipeline_mode<synchronous>, transform_indices = @transform_10, window_bounds = array<i64: 128, 32>}, {pipeline_mode = #tpu.pipeline_mode<synchronous>, transform_indices = @transform_11, window_bounds = array<i64: 1, 32>}, {transform_indices = @transform_12, window_bounds = array<i64: 2, 8, 32>}, {transform_indices = @transform_13, window_bounds = array<i64: 2, 128>}]} {
    %c0_i32 = arith.constant 0 : i32
    %0 = arith.cmpi eq, %arg1, %c0_i32 : i32
    %1 = arith.extui %0 : i1 to i32
    %c0_i32_0 = arith.constant 0 : i32
    %2 = arith.cmpi ne, %1, %c0_i32_0 : i32
    scf.if %2 {
      %c0_96 = arith.constant 0 : index
      %c0_97 = arith.constant 0 : index
      %156 = vector.load %arg3[%c0_96, %c0_97] : memref<2x128xf32, #tpu.memory_space<vmem>>, vector<2x128xf32>
      %c0_98 = arith.constant 0 : index
      %c0_99 = arith.constant 0 : index
      %157 = vector.load %arg16[%c0_98, %c0_99] : memref<2x128xf32, #tpu.memory_space<vmem>>, vector<2x128xf32>
      tpu.vector_store %arg16[%c0_98, %c0_99], %156 {strides = array<i32>} : memref<2x128xf32, #tpu.memory_space<vmem>>, vector<2x128xf32>,
    } else {
    }
    %c0 = arith.constant 0 : index
    %c0_1 = arith.constant 0 : index
    %c0_2 = arith.constant 0 : index
    %3 = vector.load %arg2[%c0, %c0_1, %c0_2] : memref<2x8x32xf32, #tpu.memory_space<vmem>>, vector<2x8x32xf32>
    %4 = vector.shape_cast %3 : vector<2x8x32xf32> to vector<16x32xf32>
    %c0_3 = arith.constant 0 : index
    %c0_4 = arith.constant 0 : index
    %5 = vector.load %arg4[%c0_3, %c0_4] : memref<32x32xf32, #tpu.memory_space<vmem>>, vector<32x32xf32>
    %cst = arith.constant dense<0.000000e+00> : vector<16x32xf32>
    %6 = tpu.matmul %4, %5, %cst {dimension_numbers = #tpu.dot_dimension_numbers<[1], [0], [0], [1], [0, 0, 1, 1], [], []>} : vector<16x32xf32>, vector<32x32xf32>, vector<16x32xf32> -> vector<16x32xf32>
    %c0_5 = arith.constant 0 : index
    %c0_6 = arith.constant 0 : index
    %7 = vector.load %arg6[%c0_5, %c0_6] : memref<1x32xf32, #tpu.memory_space<vmem>>, vector<1x32xf32>
    %8 = vector.broadcast %7 : vector<1x32xf32> to vector<16x32xf32>
    %9 = arith.addf %6, %8 : vector<16x32xf32>
    %c0_7 = arith.constant 0 : index
    %c0_8 = arith.constant 0 : index
    %10 = vector.load %arg5[%c0_7, %c0_8] : memref<32x128xf32, #tpu.memory_space<vmem>>, vector<32x128xf32>
    %cst_9 = arith.constant dense<0.000000e+00> : vector<16x128xf32>
    %11 = tpu.matmul %4, %10, %cst_9 {dimension_numbers = #tpu.dot_dimension_numbers<[1], [0], [0], [1], [0, 0, 1, 1], [], []>} : vector<16x32xf32>, vector<32x128xf32>, vector<16x128xf32> -> vector<16x128xf32>
    %c0_10 = arith.constant 0 : index
    %c0_11 = arith.constant 0 : index
    %12 = vector.load %arg7[%c0_10, %c0_11] : memref<1x128xf32, #tpu.memory_space<vmem>>, vector<1x128xf32>
    %13 = vector.broadcast %12 : vector<1x128xf32> to vector<16x128xf32>
    %14 = arith.addf %11, %13 : vector<16x128xf32>
    %c0_12 = arith.constant 0 : index
    %c0_13 = arith.constant 0 : index
    %15 = vector.load %arg8[%c0_12, %c0_13] : memref<32x128xf32, #tpu.memory_space<vmem>>, vector<32x128xf32>
    %cst_14 = arith.constant dense<0.000000e+00> : vector<16x128xf32>
    %16 = tpu.matmul %9, %15, %cst_14 {dimension_numbers = #tpu.dot_dimension_numbers<[1], [0], [0], [1], [0, 0, 1, 1], [], []>} : vector<16x32xf32>, vector<32x128xf32>, vector<16x128xf32> -> vector<16x128xf32>
    %c0_15 = arith.constant 0 : index
    %c0_16 = arith.constant 0 : index
    %17 = vector.load %arg9[%c0_15, %c0_16] : memref<128x128xf32, #tpu.memory_space<vmem>>, vector<128x128xf32>
    %cst_17 = arith.constant dense<0.000000e+00> : vector<16x128xf32>
    %18 = tpu.matmul %14, %17, %cst_17 {dimension_numbers = #tpu.dot_dimension_numbers<[1], [0], [0], [1], [0, 0, 1, 1], [], []>} : vector<16x128xf32>, vector<128x128xf32>, vector<16x128xf32> -> vector<16x128xf32>
    %19 = arith.addf %16, %18 : vector<16x128xf32>
    %c0_18 = arith.constant 0 : index
    %c0_19 = arith.constant 0 : index
    %20 = vector.load %arg10[%c0_18, %c0_19] : memref<1x128xf32, #tpu.memory_space<vmem>>, vector<1x128xf32>
    %21 = vector.broadcast %20 : vector<1x128xf32> to vector<16x128xf32>
    %22 = arith.addf %19, %21 : vector<16x128xf32>
    %23 = arith.negf %22 : vector<16x128xf32>
    %24 = math.exp %23 : vector<16x128xf32>
    %cst_20 = arith.constant 1.000000e+00 : f32
    %25 = vector.broadcast %cst_20 : f32 to vector<16x128xf32>
    %26 = arith.addf %25, %24 : vector<16x128xf32>
    %27 = arith.divf %25, %26 : vector<16x128xf32>
    %c0_21 = arith.constant 0 : index
    %c0_22 = arith.constant 0 : index
    %28 = vector.load %arg11[%c0_21, %c0_22] : memref<32x32xf32, #tpu.memory_space<vmem>>, vector<32x32xf32>
    %cst_23 = arith.constant dense<0.000000e+00> : vector<16x32xf32>
    %29 = tpu.matmul %9, %28, %cst_23 {dimension_numbers = #tpu.dot_dimension_numbers<[1], [0], [0], [1], [0, 0, 1, 1], [], []>} : vector<16x32xf32>, vector<32x32xf32>, vector<16x32xf32> -> vector<16x32xf32>
    %c0_24 = arith.constant 0 : index
    %c0_25 = arith.constant 0 : index
    %30 = vector.load %arg13[%c0_24, %c0_25] : memref<1x32xf32, #tpu.memory_space<vmem>>, vector<1x32xf32>
    %31 = vector.broadcast %30 : vector<1x32xf32> to vector<16x32xf32>
    %32 = arith.addf %29, %31 : vector<16x32xf32>
    %33 = vector.shape_cast %27 : vector<16x128xf32> to vector<2x8x128xf32>
    %34 = tpu.transpose %33, [1, 0, 2] : vector<2x8x128xf32> -> vector<8x2x128xf32>
    %c0_26 = arith.constant 0 : index
    %c0_27 = arith.constant 0 : index
    %c0_28 = arith.constant 0 : index
    %35 = vector.load %arg17[%c0_26, %c0_27, %c0_28] : memref<8x2x128xf32, #tpu.memory_space<vmem>>, vector<8x2x128xf32>
    tpu.vector_store %arg17[%c0_26, %c0_27, %c0_28], %34 {strides = array<i32>} : memref<8x2x128xf32, #tpu.memory_space<vmem>>, vector<8x2x128xf32>,
    %36 = vector.shape_cast %14 : vector<16x128xf32> to vector<2x8x128xf32>
    %37 = tpu.transpose %36, [1, 0, 2] : vector<2x8x128xf32> -> vector<8x2x128xf32>
    %c0_29 = arith.constant 0 : index
    %c0_30 = arith.constant 0 : index
    %c0_31 = arith.constant 0 : index
    %38 = vector.load %arg18[%c0_29, %c0_30, %c0_31] : memref<8x2x128xf32, #tpu.memory_space<vmem>>, vector<8x2x128xf32>
    tpu.vector_store %arg18[%c0_29, %c0_30, %c0_31], %37 {strides = array<i32>} : memref<8x2x128xf32, #tpu.memory_space<vmem>>, vector<8x2x128xf32>,
    %c0_32 = arith.constant 0 : index
    %c0_33 = arith.constant 0 : index
    %39 = vector.load %arg16[%c0_32, %c0_33] : memref<2x128xf32, #tpu.memory_space<vmem>>, vector<2x128xf32>
    %c0_i32_34 = arith.constant 0 : i32
    %40 = arith.index_cast %c0_i32_34 : i32 to index
    %c0_35 = arith.constant 0 : index
    %c0_36 = arith.constant 0 : index
    %41 = vector.load %arg17[%40, %c0_35, %c0_36] : memref<8x2x128xf32, #tpu.memory_space<vmem>>, vector<1x2x128xf32>
    %42 = vector.shape_cast %41 : vector<1x2x128xf32> to vector<2x128xf32>
    %43 = arith.index_cast %c0_i32_34 : i32 to index
    %c0_37 = arith.constant 0 : index
    %c0_38 = arith.constant 0 : index
    %44 = vector.load %arg18[%43, %c0_37, %c0_38] : memref<8x2x128xf32, #tpu.memory_space<vmem>>, vector<1x2x128xf32>
    %45 = vector.shape_cast %44 : vector<1x2x128xf32> to vector<2x128xf32>
    %46 = arith.subf %39, %45 : vector<2x128xf32>
    %47 = arith.mulf %42, %46 : vector<2x128xf32>
    %48 = arith.addf %45, %47 : vector<2x128xf32>
    %49 = arith.index_cast %c0_i32_34 : i32 to index
    %c0_39 = arith.constant 0 : index
    %c0_40 = arith.constant 0 : index
    %50 = vector.load %arg19[%49, %c0_39, %c0_40] : memref<8x2x128xf32, #tpu.memory_space<vmem>>, vector<1x2x128xf32>
    %51 = vector.shape_cast %50 : vector<1x2x128xf32> to vector<2x128xf32>
    %52 = vector.shape_cast %48 : vector<2x128xf32> to vector<1x2x128xf32>
    tpu.vector_store %arg19[%49, %c0_39, %c0_40], %52 {strides = array<i32>} : memref<8x2x128xf32, #tpu.memory_space<vmem>>, vector<1x2x128xf32>,
    %c1_i32 = arith.constant 1 : i32
    %53 = arith.index_cast %c1_i32 : i32 to index
    %c0_41 = arith.constant 0 : index
    %c0_42 = arith.constant 0 : index
    %54 = vector.load %arg17[%53, %c0_41, %c0_42] : memref<8x2x128xf32, #tpu.memory_space<vmem>>, vector<1x2x128xf32>
    %55 = vector.shape_cast %54 : vector<1x2x128xf32> to vector<2x128xf32>
    %56 = arith.index_cast %c1_i32 : i32 to index
    %c0_43 = arith.constant 0 : index
    %c0_44 = arith.constant 0 : index
    %57 = vector.load %arg18[%56, %c0_43, %c0_44] : memref<8x2x128xf32, #tpu.memory_space<vmem>>, vector<1x2x128xf32>
    %58 = vector.shape_cast %57 : vector<1x2x128xf32> to vector<2x128xf32>
    %59 = arith.subf %48, %58 : vector<2x128xf32>
    %60 = arith.mulf %55, %59 : vector<2x128xf32>
    %61 = arith.addf %58, %60 : vector<2x128xf32>
    %62 = arith.index_cast %c1_i32 : i32 to index
    %c0_45 = arith.constant 0 : index
    %c0_46 = arith.constant 0 : index
    %63 = vector.load %arg19[%62, %c0_45, %c0_46] : memref<8x2x128xf32, #tpu.memory_space<vmem>>, vector<1x2x128xf32>
    %64 = vector.shape_cast %63 : vector<1x2x128xf32> to vector<2x128xf32>
    %65 = vector.shape_cast %61 : vector<2x128xf32> to vector<1x2x128xf32>
    tpu.vector_store %arg19[%62, %c0_45, %c0_46], %65 {strides = array<i32>} : memref<8x2x128xf32, #tpu.memory_space<vmem>>, vector<1x2x128xf32>,
    %c2_i32 = arith.constant 2 : i32
    %66 = arith.index_cast %c2_i32 : i32 to index
    %c0_47 = arith.constant 0 : index
    %c0_48 = arith.constant 0 : index
    %67 = vector.load %arg17[%66, %c0_47, %c0_48] : memref<8x2x128xf32, #tpu.memory_space<vmem>>, vector<1x2x128xf32>
    %68 = vector.shape_cast %67 : vector<1x2x128xf32> to vector<2x128xf32>
    %69 = arith.index_cast %c2_i32 : i32 to index
    %c0_49 = arith.constant 0 : index
    %c0_50 = arith.constant 0 : index
    %70 = vector.load %arg18[%69, %c0_49, %c0_50] : memref<8x2x128xf32, #tpu.memory_space<vmem>>, vector<1x2x128xf32>
    %71 = vector.shape_cast %70 : vector<1x2x128xf32> to vector<2x128xf32>
    %72 = arith.subf %61, %71 : vector<2x128xf32>
    %73 = arith.mulf %68, %72 : vector<2x128xf32>
    %74 = arith.addf %71, %73 : vector<2x128xf32>
    %75 = arith.index_cast %c2_i32 : i32 to index
    %c0_51 = arith.constant 0 : index
    %c0_52 = arith.constant 0 : index
    %76 = vector.load %arg19[%75, %c0_51, %c0_52] : memref<8x2x128xf32, #tpu.memory_space<vmem>>, vector<1x2x128xf32>
    %77 = vector.shape_cast %76 : vector<1x2x128xf32> to vector<2x128xf32>
    %78 = vector.shape_cast %74 : vector<2x128xf32> to vector<1x2x128xf32>
    tpu.vector_store %arg19[%75, %c0_51, %c0_52], %78 {strides = array<i32>} : memref<8x2x128xf32, #tpu.memory_space<vmem>>, vector<1x2x128xf32>,
    %c3_i32 = arith.constant 3 : i32
    %79 = arith.index_cast %c3_i32 : i32 to index
    %c0_53 = arith.constant 0 : index
    %c0_54 = arith.constant 0 : index
    %80 = vector.load %arg17[%79, %c0_53, %c0_54] : memref<8x2x128xf32, #tpu.memory_space<vmem>>, vector<1x2x128xf32>
    %81 = vector.shape_cast %80 : vector<1x2x128xf32> to vector<2x128xf32>
    %82 = arith.index_cast %c3_i32 : i32 to index
    %c0_55 = arith.constant 0 : index
    %c0_56 = arith.constant 0 : index
    %83 = vector.load %arg18[%82, %c0_55, %c0_56] : memref<8x2x128xf32, #tpu.memory_space<vmem>>, vector<1x2x128xf32>
    %84 = vector.shape_cast %83 : vector<1x2x128xf32> to vector<2x128xf32>
    %85 = arith.subf %74, %84 : vector<2x128xf32>
    %86 = arith.mulf %81, %85 : vector<2x128xf32>
    %87 = arith.addf %84, %86 : vector<2x128xf32>
    %88 = arith.index_cast %c3_i32 : i32 to index
    %c0_57 = arith.constant 0 : index
    %c0_58 = arith.constant 0 : index
    %89 = vector.load %arg19[%88, %c0_57, %c0_58] : memref<8x2x128xf32, #tpu.memory_space<vmem>>, vector<1x2x128xf32>
    %90 = vector.shape_cast %89 : vector<1x2x128xf32> to vector<2x128xf32>
    %91 = vector.shape_cast %87 : vector<2x128xf32> to vector<1x2x128xf32>
    tpu.vector_store %arg19[%88, %c0_57, %c0_58], %91 {strides = array<i32>} : memref<8x2x128xf32, #tpu.memory_space<vmem>>, vector<1x2x128xf32>,
    %c4_i32 = arith.constant 4 : i32
    %92 = arith.index_cast %c4_i32 : i32 to index
    %c0_59 = arith.constant 0 : index
    %c0_60 = arith.constant 0 : index
    %93 = vector.load %arg17[%92, %c0_59, %c0_60] : memref<8x2x128xf32, #tpu.memory_space<vmem>>, vector<1x2x128xf32>
    %94 = vector.shape_cast %93 : vector<1x2x128xf32> to vector<2x128xf32>
    %95 = arith.index_cast %c4_i32 : i32 to index
    %c0_61 = arith.constant 0 : index
    %c0_62 = arith.constant 0 : index
    %96 = vector.load %arg18[%95, %c0_61, %c0_62] : memref<8x2x128xf32, #tpu.memory_space<vmem>>, vector<1x2x128xf32>
    %97 = vector.shape_cast %96 : vector<1x2x128xf32> to vector<2x128xf32>
    %98 = arith.subf %87, %97 : vector<2x128xf32>
    %99 = arith.mulf %94, %98 : vector<2x128xf32>
    %100 = arith.addf %97, %99 : vector<2x128xf32>
    %101 = arith.index_cast %c4_i32 : i32 to index
    %c0_63 = arith.constant 0 : index
    %c0_64 = arith.constant 0 : index
    %102 = vector.load %arg19[%101, %c0_63, %c0_64] : memref<8x2x128xf32, #tpu.memory_space<vmem>>, vector<1x2x128xf32>
    %103 = vector.shape_cast %102 : vector<1x2x128xf32> to vector<2x128xf32>
    %104 = vector.shape_cast %100 : vector<2x128xf32> to vector<1x2x128xf32>
    tpu.vector_store %arg19[%101, %c0_63, %c0_64], %104 {strides = array<i32>} : memref<8x2x128xf32, #tpu.memory_space<vmem>>, vector<1x2x128xf32>,
    %c5_i32 = arith.constant 5 : i32
    %105 = arith.index_cast %c5_i32 : i32 to index
    %c0_65 = arith.constant 0 : index
    %c0_66 = arith.constant 0 : index
    %106 = vector.load %arg17[%105, %c0_65, %c0_66] : memref<8x2x128xf32, #tpu.memory_space<vmem>>, vector<1x2x128xf32>
    %107 = vector.shape_cast %106 : vector<1x2x128xf32> to vector<2x128xf32>
    %108 = arith.index_cast %c5_i32 : i32 to index
    %c0_67 = arith.constant 0 : index
    %c0_68 = arith.constant 0 : index
    %109 = vector.load %arg18[%108, %c0_67, %c0_68] : memref<8x2x128xf32, #tpu.memory_space<vmem>>, vector<1x2x128xf32>
    %110 = vector.shape_cast %109 : vector<1x2x128xf32> to vector<2x128xf32>
    %111 = arith.subf %100, %110 : vector<2x128xf32>
    %112 = arith.mulf %107, %111 : vector<2x128xf32>
    %113 = arith.addf %110, %112 : vector<2x128xf32>
    %114 = arith.index_cast %c5_i32 : i32 to index
    %c0_69 = arith.constant 0 : index
    %c0_70 = arith.constant 0 : index
    %115 = vector.load %arg19[%114, %c0_69, %c0_70] : memref<8x2x128xf32, #tpu.memory_space<vmem>>, vector<1x2x128xf32>
    %116 = vector.shape_cast %115 : vector<1x2x128xf32> to vector<2x128xf32>
    %117 = vector.shape_cast %113 : vector<2x128xf32> to vector<1x2x128xf32>
    tpu.vector_store %arg19[%114, %c0_69, %c0_70], %117 {strides = array<i32>} : memref<8x2x128xf32, #tpu.memory_space<vmem>>, vector<1x2x128xf32>,
    %c6_i32 = arith.constant 6 : i32
    %118 = arith.index_cast %c6_i32 : i32 to index
    %c0_71 = arith.constant 0 : index
    %c0_72 = arith.constant 0 : index
    %119 = vector.load %arg17[%118, %c0_71, %c0_72] : memref<8x2x128xf32, #tpu.memory_space<vmem>>, vector<1x2x128xf32>
    %120 = vector.shape_cast %119 : vector<1x2x128xf32> to vector<2x128xf32>
    %121 = arith.index_cast %c6_i32 : i32 to index
    %c0_73 = arith.constant 0 : index
    %c0_74 = arith.constant 0 : index
    %122 = vector.load %arg18[%121, %c0_73, %c0_74] : memref<8x2x128xf32, #tpu.memory_space<vmem>>, vector<1x2x128xf32>
    %123 = vector.shape_cast %122 : vector<1x2x128xf32> to vector<2x128xf32>
    %124 = arith.subf %113, %123 : vector<2x128xf32>
    %125 = arith.mulf %120, %124 : vector<2x128xf32>
    %126 = arith.addf %123, %125 : vector<2x128xf32>
    %127 = arith.index_cast %c6_i32 : i32 to index
    %c0_75 = arith.constant 0 : index
    %c0_76 = arith.constant 0 : index
    %128 = vector.load %arg19[%127, %c0_75, %c0_76] : memref<8x2x128xf32, #tpu.memory_space<vmem>>, vector<1x2x128xf32>
    %129 = vector.shape_cast %128 : vector<1x2x128xf32> to vector<2x128xf32>
    %130 = vector.shape_cast %126 : vector<2x128xf32> to vector<1x2x128xf32>
    tpu.vector_store %arg19[%127, %c0_75, %c0_76], %130 {strides = array<i32>} : memref<8x2x128xf32, #tpu.memory_space<vmem>>, vector<1x2x128xf32>,
    %c7_i32 = arith.constant 7 : i32
    %131 = arith.index_cast %c7_i32 : i32 to index
    %c0_77 = arith.constant 0 : index
    %c0_78 = arith.constant 0 : index
    %132 = vector.load %arg17[%131, %c0_77, %c0_78] : memref<8x2x128xf32, #tpu.memory_space<vmem>>, vector<1x2x128xf32>
    %133 = vector.shape_cast %132 : vector<1x2x128xf32> to vector<2x128xf32>
    %134 = arith.index_cast %c7_i32 : i32 to index
    %c0_79 = arith.constant 0 : index
    %c0_80 = arith.constant 0 : index
    %135 = vector.load %arg18[%134, %c0_79, %c0_80] : memref<8x2x128xf32, #tpu.memory_space<vmem>>, vector<1x2x128xf32>
    %136 = vector.shape_cast %135 : vector<1x2x128xf32> to vector<2x128xf32>
    %137 = arith.subf %126, %136 : vector<2x128xf32>
    %138 = arith.mulf %133, %137 : vector<2x128xf32>
    %139 = arith.addf %136, %138 : vector<2x128xf32>
    %140 = arith.index_cast %c7_i32 : i32 to index
    %c0_81 = arith.constant 0 : index
    %c0_82 = arith.constant 0 : index
    %141 = vector.load %arg19[%140, %c0_81, %c0_82] : memref<8x2x128xf32, #tpu.memory_space<vmem>>, vector<1x2x128xf32>
    %142 = vector.shape_cast %141 : vector<1x2x128xf32> to vector<2x128xf32>
    %143 = vector.shape_cast %139 : vector<2x128xf32> to vector<1x2x128xf32>
    tpu.vector_store %arg19[%140, %c0_81, %c0_82], %143 {strides = array<i32>} : memref<8x2x128xf32, #tpu.memory_space<vmem>>, vector<1x2x128xf32>,
    %c8_i32 = arith.constant 8 : i32
    %c0_83 = arith.constant 0 : index
    %c0_84 = arith.constant 0 : index
    %144 = vector.load %arg16[%c0_83, %c0_84] : memref<2x128xf32, #tpu.memory_space<vmem>>, vector<2x128xf32>
    tpu.vector_store %arg16[%c0_83, %c0_84], %139 {strides = array<i32>} : memref<2x128xf32, #tpu.memory_space<vmem>>, vector<2x128xf32>,
    %c0_85 = arith.constant 0 : index
    %c0_86 = arith.constant 0 : index
    %c0_87 = arith.constant 0 : index
    %145 = vector.load %arg19[%c0_85, %c0_86, %c0_87] : memref<8x2x128xf32, #tpu.memory_space<vmem>>, vector<8x2x128xf32>
    %146 = tpu.transpose %145, [1, 0, 2] : vector<8x2x128xf32> -> vector<2x8x128xf32>
    %147 = vector.shape_cast %146 : vector<2x8x128xf32> to vector<16x128xf32>
    %c0_88 = arith.constant 0 : index
    %c0_89 = arith.constant 0 : index
    %148 = vector.load %arg12[%c0_88, %c0_89] : memref<128x32xf32, #tpu.memory_space<vmem>>, vector<128x32xf32>
    %cst_90 = arith.constant dense<0.000000e+00> : vector<16x32xf32>
    %149 = tpu.matmul %147, %148, %cst_90 {dimension_numbers = #tpu.dot_dimension_numbers<[1], [0], [0], [1], [0, 0, 1, 1], [], []>} : vector<16x128xf32>, vector<128x32xf32>, vector<16x32xf32> -> vector<16x32xf32>
    %150 = arith.addf %32, %149 : vector<16x32xf32>
    %151 = vector.shape_cast %150 : vector<16x32xf32> to vector<2x8x32xf32>
    %c0_91 = arith.constant 0 : index
    %c0_92 = arith.constant 0 : index
    %c0_93 = arith.constant 0 : index
    %152 = vector.load %arg14[%c0_91, %c0_92, %c0_93] : memref<2x8x32xf32, #tpu.memory_space<vmem>>, vector<2x8x32xf32>
    tpu.vector_store %arg14[%c0_91, %c0_92, %c0_93], %151 {strides = array<i32>} : memref<2x8x32xf32, #tpu.memory_space<vmem>>, vector<2x8x32xf32>,
    %c0_i32_94 = arith.constant 0 : i32
    %153 = arith.cmpi eq, %arg1, %c0_i32_94 : i32
    %154 = arith.extui %153 : i1 to i32
    %c0_i32_95 = arith.constant 0 : i32
    %155 = arith.cmpi ne, %154, %c0_i32_95 : i32
    scf.if %155 {
      %c0_96 = arith.constant 0 : index
      %c0_97 = arith.constant 0 : index
      %156 = vector.load %arg15[%c0_96, %c0_97] : memref<2x128xf32, #tpu.memory_space<vmem>>, vector<2x128xf32>
      tpu.vector_store %arg15[%c0_96, %c0_97], %139 {strides = array<i32>} : memref<2x128xf32, #tpu.memory_space<vmem>>, vector<2x128xf32>,
    } else {
    }
    return
  }
  func.func @transform_0(%arg0: i32, %arg1: i32) -> (i32, i32, i32) {
    %c0_i32 = arith.constant 0 : i32
    %c0_i32_0 = arith.constant 0 : i32
    return %arg0, %arg1, %c0_i32 : i32, i32, i32
  }
  func.func @transform_1(%arg0: i32, %arg1: i32) -> (i32, i32) {
    %c0_i32 = arith.constant 0 : i32
    %c0_i32_0 = arith.constant 0 : i32
    return %arg0, %c0_i32 : i32, i32
  }
  func.func @transform_2(%arg0: i32, %arg1: i32) -> (i32, i32) {
    %c0_i32 = arith.constant 0 : i32
    %c0_i32_0 = arith.constant 0 : i32
    %c0_i32_1 = arith.constant 0 : i32
    return %c0_i32, %c0_i32_0 : i32, i32
  }
  func.func @transform_3(%arg0: i32, %arg1: i32) -> (i32, i32) {
    %c0_i32 = arith.constant 0 : i32
    %c0_i32_0 = arith.constant 0 : i32
    %c0_i32_1 = arith.constant 0 : i32
    return %c0_i32, %c0_i32_0 : i32, i32
  }
  func.func @transform_4(%arg0: i32, %arg1: i32) -> (i32, i32) {
    %c0_i32 = arith.constant 0 : i32
    %c0_i32_0 = arith.constant 0 : i32
    %c0_i32_1 = arith.constant 0 : i32
    return %c0_i32, %c0_i32_0 : i32, i32
  }
  func.func @transform_5(%arg0: i32, %arg1: i32) -> (i32, i32) {
    %c0_i32 = arith.constant 0 : i32
    %c0_i32_0 = arith.constant 0 : i32
    %c0_i32_1 = arith.constant 0 : i32
    return %c0_i32, %c0_i32_0 : i32, i32
  }
  func.func @transform_6(%arg0: i32, %arg1: i32) -> (i32, i32) {
    %c0_i32 = arith.constant 0 : i32
    %c0_i32_0 = arith.constant 0 : i32
    %c0_i32_1 = arith.constant 0 : i32
    return %c0_i32, %c0_i32_0 : i32, i32
  }
  func.func @transform_7(%arg0: i32, %arg1: i32) -> (i32, i32) {
    %c0_i32 = arith.constant 0 : i32
    %c0_i32_0 = arith.constant 0 : i32
    %c0_i32_1 = arith.constant 0 : i32
    return %c0_i32, %c0_i32_0 : i32, i32
  }
  func.func @transform_8(%arg0: i32, %arg1: i32) -> (i32, i32) {
    %c0_i32 = arith.constant 0 : i32
    %c0_i32_0 = arith.constant 0 : i32
    %c0_i32_1 = arith.constant 0 : i32
    return %c0_i32, %c0_i32_0 : i32, i32
  }
  func.func @transform_9(%arg0: i32, %arg1: i32) -> (i32, i32) {
    %c0_i32 = arith.constant 0 : i32
    %c0_i32_0 = arith.constant 0 : i32
    %c0_i32_1 = arith.constant 0 : i32
    return %c0_i32, %c0_i32_0 : i32, i32
  }
  func.func @transform_10(%arg0: i32, %arg1: i32) -> (i32, i32) {
    %c0_i32 = arith.constant 0 : i32
    %c0_i32_0 = arith.constant 0 : i32
    %c0_i32_1 = arith.constant 0 : i32
    return %c0_i32, %c0_i32_0 : i32, i32
  }
  func.func @transform_11(%arg0: i32, %arg1: i32) -> (i32, i32) {
    %c0_i32 = arith.constant 0 : i32
    %c0_i32_0 = arith.constant 0 : i32
    %c0_i32_1 = arith.constant 0 : i32
    return %c0_i32, %c0_i32_0 : i32, i32
  }
  func.func @transform_12(%arg0: i32, %arg1: i32) -> (i32, i32, i32) {
    %c0_i32 = arith.constant 0 : i32
    %c0_i32_0 = arith.constant 0 : i32
    return %arg0, %arg1, %c0_i32 : i32, i32, i32
  }
  func.func @transform_13(%arg0: i32, %arg1: i32) -> (i32, i32) {
    %c0_i32 = arith.constant 0 : i32
    %c0_i32_0 = arith.constant 0 : i32
    return %arg0, %c0_i32 : i32, i32
  }
}

</mosaic_0001>

<llo_original>
// kernel: thunder_core_forward.1
$region0: #{thunder_core_forward.1}
  #allocation0 [shape = 'u32[]', space=smem, size = 0x4, offset = 0x4, fixed_abs, tag = 'smem constant byte address 0x4 - core index']
  #allocation1 [shape = 'u32[144,128]{1,0:T(1,128)}', space=vmem, size = 0x12000, scoped, tag = 'internal scratch']
  #allocation2 [shape = 'f32[2,128]{1,0:T(2,128)}', space=vmem, size = 0x400, scoped, tag = 'scratch operand']
  #allocation3 [shape = 'f32[8,2,128]{2,1,0:T(2,128)}', space=vmem, size = 0x2000, scoped, tag = 'scratch operand']
  #allocation4 [shape = 'f32[8,2,128]{2,1,0:T(2,128)}', space=vmem, size = 0x2000, scoped, tag = 'scratch operand']
  #allocation5 [shape = 'f32[8,2,128]{2,1,0:T(2,128)}', space=vmem, size = 0x2000, scoped, tag = 'scratch operand']
  %s0 = inlined_call_operand.vmem [shape: f32[2,8,32], index: 0, kind: input, shape index: {}]
  %s1 = inlined_call_operand.vmem [shape: f32[2,128], index: 1, kind: input, shape index: {}]
  %s2 = inlined_call_operand.vmem [shape: f32[32,32], index: 2, kind: input, shape index: {}]
  %s3 = inlined_call_operand.vmem [shape: f32[32,128], index: 3, kind: input, shape index: {}]
  %s4 = inlined_call_operand.vmem [shape: f32[1,32], index: 4, kind: input, shape index: {}]
  %s5 = inlined_call_operand.vmem [shape: f32[1,128], index: 5, kind: input, shape index: {}]
  %s6 = inlined_call_operand.vmem [shape: f32[32,128], index: 6, kind: input, shape index: {}]
  %s7 = inlined_call_operand.vmem [shape: f32[128,128], index: 7, kind: input, shape index: {}]
  %s8 = inlined_call_operand.vmem [shape: f32[1,128], index: 8, kind: input, shape index: {}]
  %s9 = inlined_call_operand.vmem [shape: f32[32,32], index: 9, kind: input, shape index: {}]
  %s10 = inlined_call_operand.vmem [shape: f32[128,32], index: 10, kind: input, shape index: {}]
  %s11 = inlined_call_operand.vmem [shape: f32[1,32], index: 11, kind: input, shape index: {}]
  %s12 = inlined_call_operand.hbm [shape: f32[2,8,32], index: 12, kind: output, shape index: {0}]
  %s13 = inlined_call_operand.hbm [shape: f32[2,128], index: 13, kind: output, shape index: {1}]
  %14 = xla_tuple %s12, %s13
  %s15 = sld [smem:[#allocation0]]
  $region74: #{thunder_core_forward.1} parent=0
    _
  %s17 = ssub.s32 1, %s15
  %s18 = scalar_select 0, %s17, %s15
  $region1: #{thunder_core_forward.1} parent=0
    #allocation6 [shape = 'u8[8192]{0}', space=vmem, size = 0x2000, scoped, tag = 'output window, operand 0, single buffered']
    #allocation7 [shape = 's32[1]{0}', space=sflag, size = 0x4, scoped, tag = 'scoped memory for thunder_core_forward.1']
    #allocation8 [shape = 'u8[1024]{0}', space=vmem, size = 0x400, scoped, tag = 'output window, operand 1, single buffered']
    #allocation9 [shape = 's32[1]{0}', space=sflag, size = 0x4, scoped, tag = 'scoped memory for thunder_core_forward.1']
    %19 = vsyncpa [#allocation7], 0
    %20 = vsyncpa [#allocation9], 0
    // Predicated region
    $region2: #{thunder_core_forward.1} parent=1 // pred_check
      _
    $region3: #{thunder_core_forward.1} parent=1 // pred_check_branch
      %22 = sbr.rel (0) target = $region5
    $region4: #{thunder_core_forward.1} parent=1 // pred_region
      _
    $region5: #{thunder_core_forward.1} parent=1 // pred_fallthru
      _
    // Predicated region
    $region6: #{thunder_core_forward.1} parent=1 // pred_check
      _
    $region7: #{thunder_core_forward.1} parent=1 // pred_check_branch
      %24 = sbr.rel (0) target = $region9
    $region8: #{thunder_core_forward.1} parent=1 // pred_region
      _
    $region9: #{thunder_core_forward.1} parent=1 // pred_fallthru
      _
    // Predicated region
    $region10: #{thunder_core_forward.1} parent=1 // pred_check
      _
    $region11: #{thunder_core_forward.1} parent=1 // pred_check_branch
      %26 = sbr.rel (0) target = $region13
    $region12: #{thunder_core_forward.1} parent=1 // pred_region
      _
    $region13: #{thunder_core_forward.1} parent=1 // pred_fallthru
      _
    // Predicated region
    $region14: #{thunder_core_forward.1} parent=1 // pred_check
      _
    $region15: #{thunder_core_forward.1} parent=1 // pred_check_branch
      %28 = sbr.rel (0) target = $region17
    $region16: #{thunder_core_forward.1} parent=1 // pred_region
      _
    $region17: #{thunder_core_forward.1} parent=1 // pred_fallthru
      _
    // Predicated region
    $region18: #{thunder_core_forward.1} parent=1 // pred_check
      _
    $region19: #{thunder_core_forward.1} parent=1 // pred_check_branch
      %30 = sbr.rel (0) target = $region21
    $region20: #{thunder_core_forward.1} parent=1 // pred_region
      _
    $region21: #{thunder_core_forward.1} parent=1 // pred_fallthru
      _
    // Predicated region
    $region22: #{thunder_core_forward.1} parent=1 // pred_check
      _
    $region23: #{thunder_core_forward.1} parent=1 // pred_check_branch
      %32 = sbr.rel (0) target = $region25
    $region24: #{thunder_core_forward.1} parent=1 // pred_region
      _
    $region25: #{thunder_core_forward.1} parent=1 // pred_fallthru
      _
    // Predicated region
    $region26: #{thunder_core_forward.1} parent=1 // pred_check
      _
    $region27: #{thunder_core_forward.1} parent=1 // pred_check_branch
      %34 = sbr.rel (0) target = $region29
    $region28: #{thunder_core_forward.1} parent=1 // pred_region
      _
    $region29: #{thunder_core_forward.1} parent=1 // pred_fallthru
      _
    // Predicated region
    $region30: #{thunder_core_forward.1} parent=1 // pred_check
      _
    $region31: #{thunder_core_forward.1} parent=1 // pred_check_branch
      %36 = sbr.rel (0) target = $region33
    $region32: #{thunder_core_forward.1} parent=1 // pred_region
      _
    $region33: #{thunder_core_forward.1} parent=1 // pred_fallthru
      _
    // Predicated region
    $region34: #{thunder_core_forward.1} parent=1 // pred_check
      _
    $region35: #{thunder_core_forward.1} parent=1 // pred_check_branch
      %38 = sbr.rel (0) target = $region37
    $region36: #{thunder_core_forward.1} parent=1 // pred_region
      _
    $region37: #{thunder_core_forward.1} parent=1 // pred_fallthru
      _
    // Predicated region
    $region38: #{thunder_core_forward.1} parent=1 // pred_check
      _
    $region39: #{thunder_core_forward.1} parent=1 // pred_check_branch
      %40 = sbr.rel (0) target = $region41
    $region40: #{thunder_core_forward.1} parent=1 // pred_region
      _
    $region41: #{thunder_core_forward.1} parent=1 // pred_fallthru
      _
    // Predicated region
    $region42: #{thunder_core_forward.1} parent=1 // pred_check
      _
    $region43: #{thunder_core_forward.1} parent=1 // pred_check_branch
      %42 = sbr.rel (0) target = $region45
    $region44: #{thunder_core_forward.1} parent=1 // pred_region
      _
    $region45: #{thunder_core_forward.1} parent=1 // pred_fallthru
      _
    // Predicated region
    $region46: #{thunder_core_forward.1} parent=1 // pred_check
      _
    $region47: #{thunder_core_forward.1} parent=1 // pred_check_branch
      %44 = sbr.rel (0) target = $region49
    $region48: #{thunder_core_forward.1} parent=1 // pred_region
      _
    $region49: #{thunder_core_forward.1} parent=1 // pred_fallthru
      _
    %p45 = scmp.eq.s32.totalorder 0, 0
    // Predicated region
    $region50: #{thunder_core_forward.1} parent=1 // pred_check
      %p46 = pneg %p45
    $region51: #{thunder_core_forward.1} parent=1 // pred_check_branch
      %48 = sbr.rel (%p46) target = $region53
    $region52: #{thunder_core_forward.1} parent=1 // pred_region
      %v49 = vld [vmem:[%s1] sm:$0x3]
      %50 = vst [vmem:[#allocation2] sm:$0x3] %v49
    $region53: #{thunder_core_forward.1} parent=1 // pred_fallthru
      _
    %v51 = vld [vmem:[%s0] sm:$0xff]
    %v52 = vld [vmem:[%s0 + $0x8] sm:$0xff]
    %v53 = vld [vmem:[%s2] sm:$0xff]
    %v54 = vld [vmem:[%s2 + $0x8] sm:$0xff]
    %v55 = vld [vmem:[%s2 + $0x10] sm:$0xff]
    %v56 = vld [vmem:[%s2 + $0x18] sm:$0xff]
    %v57 = vld [vmem:[%s4] sm:$0x1]
    %v59 = vlaneseq
    %v60 = vshrl.u32 %v59, 7
    %v61 = vsub.s32 0, %v60
    %v62 = vrot.slane %v57, %v61
    %vm64 = vcmask 261120
    %v66 = vsel %vm64, %v51, 0
    %v69 = vsel %vm64, %v52, 0
    %71 = vmatprep.subr.mxu0 0.0
    %72 = vmatpush1.msra.mxu0 %v53
    %73 = vmatprep.subr.mxu0 0.0
    %74 = vmatpush1.msra.mxu0 %v54
    %75 = vmatprep.subr.mxu0 0.0
    %76 = vmatpush1.msra.mxu0 %v55
    %77 = vmatprep.subr.mxu0 0.0
    %78 = vmatpush1.msra.mxu0 %v56
    %79 = vmatprep.subr.mxu0 0.0
    %80 = vmatpush1.msra.mxu0 0.0
    %81 = vmatprep.subr.mxu0 0.0
    %82 = vmatpush1.msra.mxu0 0.0
    %83 = vmatprep.subr.mxu0 0.0
    %84 = vmatpush1.msra.mxu0 0.0
    %85 = vmatprep.subr.mxu0 0.0
    %86 = vmatpush1.msra.mxu0 0.0
    %87 = vmatprep.subr.mxu0 0.0
    %88 = vmatpush1.msra.mxu0 0.0
    %89 = vmatprep.subr.mxu0 0.0
    %90 = vmatpush1.msra.mxu0 0.0
    %91 = vmatprep.subr.mxu0 0.0
    %92 = vmatpush1.msra.mxu0 0.0
    %93 = vmatprep.subr.mxu0 0.0
    %94 = vmatpush1.msra.mxu0 0.0
    %95 = vmatprep.subr.mxu0 0.0
    %96 = vmatpush1.msra.mxu0 0.0
    %97 = vmatprep.subr.mxu0 0.0
    %98 = vmatpush1.msra.mxu0 0.0
    %99 = vmatprep.subr.mxu0 0.0
    %100 = vmatpush1.msra.mxu0 0.0
    %101 = vmatprep.subr.mxu0 0.0
    %102 = vmatpush1.msra.mxu0 0.0
    %103 = vmatprep.subr.mxu0 0.0
    %104 = vmatpush1.msra.mxu0 0.0
    %105 = vmatprep.subr.mxu0 0.0
    %106 = vmatpush1.msra.mxu0 0.0
    %107 = vmatprep.subr.mxu0 0.0
    %108 = vmatpush1.msra.mxu0 0.0
    %109 = vmatprep.subr.mxu0 0.0
    %110 = vmatpush1.msra.mxu0 0.0
    %111 = vmatprep.subr.mxu0 0.0
    %112 = vmatpush1.msra.mxu0 0.0
    %113 = vmatprep.subr.mxu0 0.0
    %114 = vmatpush1.msra.mxu0 0.0
    %115 = vmatprep.subr.mxu0 0.0
    %116 = vmatpush1.msra.mxu0 0.0
    %117 = vmatprep.subr.mxu0 0.0
    %118 = vmatpush1.msra.mxu0 0.0
    %119 = vmatprep.subr.mxu0 0.0
    %120 = vmatpush1.msra.mxu0 0.0
    %121 = vmatprep.subr.mxu0 0.0
    %122 = vmatpush1.msra.mxu0 0.0
    %123 = vmatprep.subr.mxu0 0.0
    %124 = vmatpush1.msra.mxu0 0.0
    %125 = vmatprep.subr.mxu0 0.0
    %126 = vmatpush1.msra.mxu0 0.0
    %127 = vmatprep.subr.mxu0 0.0
    %128 = vmatpush1.msra.mxu0 0.0
    %129 = vmatprep.subr.mxu0 0.0
    %130 = vmatpush1.msra.mxu0 0.0
    %131 = vmatprep.subr.mxu0 0.0
    %132 = vmatpush1.msra.mxu0 0.0
    %133 = vmatprep.subr.mxu0 0.0
    %134 = vmatpush1.msra.mxu0 0.0
    %135 = vmatprep.mubr.f32.mxu0 0.0
    %136 = vmatmul.mubr.f32.gmra.mrb[0].mxu0 %v66
    %v137 = vpop.f32.mrb[0].mxu0
    %v138 = vadd.f32 %v62, %v137
    %v139 = vpop.f32.mrb[0].mxu0
    %140 = vmatprep.mubr.f32.mxu0 0.0
    %141 = vmatmul.mubr.f32.gmra.mrb[0].mxu0 %v69
    %v142 = vpop.f32.mrb[0].mxu0
    %v143 = vadd.f32 %v62, %v142
    %v144 = vpop.f32.mrb[0].mxu0
    %145 = vdwg.mxu0
    %v146 = vld [vmem:[%s3] sm:$0xff]
    %v147 = vld [vmem:[%s3 + $0x8] sm:$0xff]
    %v148 = vld [vmem:[%s3 + $0x10] sm:$0xff]
    %v149 = vld [vmem:[%s3 + $0x18] sm:$0xff]
    %v150 = vld [vmem:[%s5] sm:$0x1]
    %v152 = vlaneseq
    %v153 = vshrl.u32 %v152, 7
    %v154 = vsub.s32 0, %v153
    %v155 = vrot.slane %v150, %v154
    %157 = vmatprep.subr.mxu0 0.0
    %158 = vmatpush1.msra.mxu0 %v146
    %159 = vmatprep.subr.mxu0 0.0
    %160 = vmatpush1.msra.mxu0 %v147
    %161 = vmatprep.subr.mxu0 0.0
    %162 = vmatpush1.msra.mxu0 %v148
    %163 = vmatprep.subr.mxu0 0.0
    %164 = vmatpush1.msra.mxu0 %v149
    %165 = vmatprep.subr.mxu0 0.0
    %166 = vmatpush1.msra.mxu0 0.0
    %167 = vmatprep.subr.mxu0 0.0
    %168 = vmatpush1.msra.mxu0 0.0
    %169 = vmatprep.subr.mxu0 0.0
    %170 = vmatpush1.msra.mxu0 0.0
    %171 = vmatprep.subr.mxu0 0.0
    %172 = vmatpush1.msra.mxu0 0.0
    %173 = vmatprep.subr.mxu0 0.0
    %174 = vmatpush1.msra.mxu0 0.0
    %175 = vmatprep.subr.mxu0 0.0
    %176 = vmatpush1.msra.mxu0 0.0
    %177 = vmatprep.subr.mxu0 0.0
    %178 = vmatpush1.msra.mxu0 0.0
    %179 = vmatprep.subr.mxu0 0.0
    %180 = vmatpush1.msra.mxu0 0.0
    %181 = vmatprep.subr.mxu0 0.0
    %182 = vmatpush1.msra.mxu0 0.0
    %183 = vmatprep.subr.mxu0 0.0
    %184 = vmatpush1.msra.mxu0 0.0
    %185 = vmatprep.subr.mxu0 0.0
    %186 = vmatpush1.msra.mxu0 0.0
    %187 = vmatprep.subr.mxu0 0.0
    %188 = vmatpush1.msra.mxu0 0.0
    %189 = vmatprep.subr.mxu0 0.0
    %190 = vmatpush1.msra.mxu0 0.0
    %191 = vmatprep.subr.mxu0 0.0
    %192 = vmatpush1.msra.mxu0 0.0
    %193 = vmatprep.subr.mxu0 0.0
    %194 = vmatpush1.msra.mxu0 0.0
    %195 = vmatprep.subr.mxu0 0.0
    %196 = vmatpush1.msra.mxu0 0.0
    %197 = vmatprep.subr.mxu0 0.0
    %198 = vmatpush1.msra.mxu0 0.0
    %199 = vmatprep.subr.mxu0 0.0
    %200 = vmatpush1.msra.mxu0 0.0
    %201 = vmatprep.subr.mxu0 0.0
    %202 = vmatpush1.msra.mxu0 0.0
    %203 = vmatprep.subr.mxu0 0.0
    %204 = vmatpush1.msra.mxu0 0.0
    %205 = vmatprep.subr.mxu0 0.0
    %206 = vmatpush1.msra.mxu0 0.0
    %207 = vmatprep.subr.mxu0 0.0
    %208 = vmatpush1.msra.mxu0 0.0
    %209 = vmatprep.subr.mxu0 0.0
    %210 = vmatpush1.msra.mxu0 0.0
    %211 = vmatprep.subr.mxu0 0.0
    %212 = vmatpush1.msra.mxu0 0.0
    %213 = vmatprep.subr.mxu0 0.0
    %214 = vmatpush1.msra.mxu0 0.0
    %215 = vmatprep.subr.mxu0 0.0
    %216 = vmatpush1.msra.mxu0 0.0
    %217 = vmatprep.subr.mxu0 0.0
    %218 = vmatpush1.msra.mxu0 0.0
    %219 = vmatprep.subr.mxu0 0.0
    %220 = vmatpush1.msra.mxu0 0.0
    %221 = vmatprep.mubr.f32.mxu0 0.0
    %222 = vmatmul.mubr.f32.gmra.mrb[0].mxu0 %v66
    %v223 = vpop.f32.mrb[0].mxu0
    %v224 = vadd.f32 %v155, %v223
    %v225 = vpop.f32.mrb[0].mxu0
    %226 = vmatprep.mubr.f32.mxu0 0.0
    %227 = vmatmul.mubr.f32.gmra.mrb[0].mxu0 %v69
    %v228 = vpop.f32.mrb[0].mxu0
    %v229 = vadd.f32 %v155, %v228
    %v230 = vpop.f32.mrb[0].mxu0
    %231 = vdwg.mxu0
    %v232 = vld [vmem:[%s6] sm:$0xff]
    %v233 = vld [vmem:[%s6 + $0x8] sm:$0xff]
    %v234 = vld [vmem:[%s6 + $0x10] sm:$0xff]
    %v235 = vld [vmem:[%s6 + $0x18] sm:$0xff]
    %v236 = vld [vmem:[%s7] sm:$0xff]
    %v237 = vld [vmem:[%s7 + $0x8] sm:$0xff]
    %v238 = vld [vmem:[%s7 + $0x10] sm:$0xff]
    %v239 = vld [vmem:[%s7 + $0x18] sm:$0xff]
    %v240 = vld [vmem:[%s7 + $0x20] sm:$0xff]
    %v241 = vld [vmem:[%s7 + $0x28] sm:$0xff]
    %v242 = vld [vmem:[%s7 + $0x30] sm:$0xff]
    %v243 = vld [vmem:[%s7 + $0x38] sm:$0xff]
    %v244 = vld [vmem:[%s7 + $0x40] sm:$0xff]
    %v245 = vld [vmem:[%s7 + $0x48] sm:$0xff]
    %v246 = vld [vmem:[%s7 + $0x50] sm:$0xff]
    %v247 = vld [vmem:[%s7 + $0x58] sm:$0xff]
    %v248 = vld [vmem:[%s7 + $0x60] sm:$0xff]
    %v249 = vld [vmem:[%s7 + $0x68] sm:$0xff]
    %v250 = vld [vmem:[%s7 + $0x70] sm:$0xff]
    %v251 = vld [vmem:[%s7 + $0x78] sm:$0xff]
    %252 = vmatprep.subr.mxu0 0.0
    %253 = vmatpush1.msra.mxu0 %v236
    %254 = vmatprep.subr.mxu0 0.0
    %255 = vmatpush1.msra.mxu0 %v237
    %256 = vmatprep.subr.mxu0 0.0
    %257 = vmatpush1.msra.mxu0 %v238
    %258 = vmatprep.subr.mxu0 0.0
    %259 = vmatpush1.msra.mxu0 %v239
    %260 = vmatprep.subr.mxu0 0.0
    %261 = vmatpush1.msra.mxu0 %v240
    %262 = vmatprep.subr.mxu0 0.0
    %263 = vmatpush1.msra.mxu0 %v241
    %264 = vmatprep.subr.mxu0 0.0
    %265 = vmatpush1.msra.mxu0 %v242
    %266 = vmatprep.subr.mxu0 0.0
    %267 = vmatpush1.msra.mxu0 %v243
    %268 = vmatprep.subr.mxu0 0.0
    %269 = vmatpush1.msra.mxu0 %v244
    %270 = vmatprep.subr.mxu0 0.0
    %271 = vmatpush1.msra.mxu0 %v245
    %272 = vmatprep.subr.mxu0 0.0
    %273 = vmatpush1.msra.mxu0 %v246
    %274 = vmatprep.subr.mxu0 0.0
    %275 = vmatpush1.msra.mxu0 %v247
    %276 = vmatprep.subr.mxu0 0.0
    %277 = vmatpush1.msra.mxu0 %v248
    %278 = vmatprep.subr.mxu0 0.0
    %279 = vmatpush1.msra.mxu0 %v249
    %280 = vmatprep.subr.mxu0 0.0
    %281 = vmatpush1.msra.mxu0 %v250
    %282 = vmatprep.subr.mxu0 0.0
    %283 = vmatpush1.msra.mxu0 %v251
    %284 = vmatprep.subr.mxu0 0.0
    %285 = vmatpush1.msra.mxu0 0.0
    %286 = vmatprep.subr.mxu0 0.0
    %287 = vmatpush1.msra.mxu0 0.0
    %288 = vmatprep.subr.mxu0 0.0
    %289 = vmatpush1.msra.mxu0 0.0
    %290 = vmatprep.subr.mxu0 0.0
    %291 = vmatpush1.msra.mxu0 0.0
    %292 = vmatprep.subr.mxu0 0.0
    %293 = vmatpush1.msra.mxu0 0.0
    %294 = vmatprep.subr.mxu0 0.0
    %295 = vmatpush1.msra.mxu0 0.0
    %296 = vmatprep.subr.mxu0 0.0
    %297 = vmatpush1.msra.mxu0 0.0
    %298 = vmatprep.subr.mxu0 0.0
    %299 = vmatpush1.msra.mxu0 0.0
    %300 = vmatprep.subr.mxu0 0.0
    %301 = vmatpush1.msra.mxu0 0.0
    %302 = vmatprep.subr.mxu0 0.0
    %303 = vmatpush1.msra.mxu0 0.0
    %304 = vmatprep.subr.mxu0 0.0
    %305 = vmatpush1.msra.mxu0 0.0
    %306 = vmatprep.subr.mxu0 0.0
    %307 = vmatpush1.msra.mxu0 0.0
    %308 = vmatprep.subr.mxu0 0.0
    %309 = vmatpush1.msra.mxu0 0.0
    %310 = vmatprep.subr.mxu0 0.0
    %311 = vmatpush1.msra.mxu0 0.0
    %312 = vmatprep.subr.mxu0 0.0
    %313 = vmatpush1.msra.mxu0 0.0
    %314 = vmatprep.subr.mxu0 0.0
    %315 = vmatpush1.msra.mxu0 0.0
    %316 = vmatprep.mubr.f32.mxu0 0.0
    %317 = vmatmul.mubr.f32.gmra.mrb[0].mxu0 %v224
    %v318 = vpop.f32.mrb[0].mxu0
    %v319 = vadd.f32 0.0, %v318
    %v320 = vpop.f32.mrb[0].mxu0
    %321 = vmatprep.mubr.f32.mxu0 0.0
    %322 = vmatmul.mubr.f32.gmra.mrb[0].mxu0 %v229
    %v323 = vpop.f32.mrb[0].mxu0
    %v324 = vadd.f32 0.0, %v323
    %v325 = vpop.f32.mrb[0].mxu0
    %326 = vdwg.mxu0
    %v328 = vsel %vm64, %v138, 0
    %v331 = vsel %vm64, %v143, 0
    %333 = vmatprep.subr.mxu0 0.0
    %334 = vmatpush1.msra.mxu0 %v232
    %335 = vmatprep.subr.mxu0 0.0
    %336 = vmatpush1.msra.mxu0 %v233
    %337 = vmatprep.subr.mxu0 0.0
    %338 = vmatpush1.msra.mxu0 %v234
    %339 = vmatprep.subr.mxu0 0.0
    %340 = vmatpush1.msra.mxu0 %v235
    %341 = vmatprep.subr.mxu0 0.0
    %342 = vmatpush1.msra.mxu0 0.0
    %343 = vmatprep.subr.mxu0 0.0
    %344 = vmatpush1.msra.mxu0 0.0
    %345 = vmatprep.subr.mxu0 0.0
    %346 = vmatpush1.msra.mxu0 0.0
    %347 = vmatprep.subr.mxu0 0.0
    %348 = vmatpush1.msra.mxu0 0.0
    %349 = vmatprep.subr.mxu0 0.0
    %350 = vmatpush1.msra.mxu0 0.0
    %351 = vmatprep.subr.mxu0 0.0
    %352 = vmatpush1.msra.mxu0 0.0
    %353 = vmatprep.subr.mxu0 0.0
    %354 = vmatpush1.msra.mxu0 0.0
    %355 = vmatprep.subr.mxu0 0.0
    %356 = vmatpush1.msra.mxu0 0.0
    %357 = vmatprep.subr.mxu0 0.0
    %358 = vmatpush1.msra.mxu0 0.0
    %359 = vmatprep.subr.mxu0 0.0
    %360 = vmatpush1.msra.mxu0 0.0
    %361 = vmatprep.subr.mxu0 0.0
    %362 = vmatpush1.msra.mxu0 0.0
    %363 = vmatprep.subr.mxu0 0.0
    %364 = vmatpush1.msra.mxu0 0.0
    %365 = vmatprep.subr.mxu0 0.0
    %366 = vmatpush1.msra.mxu0 0.0
    %367 = vmatprep.subr.mxu0 0.0
    %368 = vmatpush1.msra.mxu0 0.0
    %369 = vmatprep.subr.mxu0 0.0
    %370 = vmatpush1.msra.mxu0 0.0
    %371 = vmatprep.subr.mxu0 0.0
    %372 = vmatpush1.msra.mxu0 0.0
    %373 = vmatprep.subr.mxu0 0.0
    %374 = vmatpush1.msra.mxu0 0.0
    %375 = vmatprep.subr.mxu0 0.0
    %376 = vmatpush1.msra.mxu0 0.0
    %377 = vmatprep.subr.mxu0 0.0
    %378 = vmatpush1.msra.mxu0 0.0
    %379 = vmatprep.subr.mxu0 0.0
    %380 = vmatpush1.msra.mxu0 0.0
    %381 = vmatprep.subr.mxu0 0.0
    %382 = vmatpush1.msra.mxu0 0.0
    %383 = vmatprep.subr.mxu0 0.0
    %384 = vmatpush1.msra.mxu0 0.0
    %385 = vmatprep.subr.mxu0 0.0
    %386 = vmatpush1.msra.mxu0 0.0
    %387 = vmatprep.subr.mxu0 0.0
    %388 = vmatpush1.msra.mxu0 0.0
    %389 = vmatprep.subr.mxu0 0.0
    %390 = vmatpush1.msra.mxu0 0.0
    %391 = vmatprep.subr.mxu0 0.0
    %392 = vmatpush1.msra.mxu0 0.0
    %393 = vmatprep.subr.mxu0 0.0
    %394 = vmatpush1.msra.mxu0 0.0
    %395 = vmatprep.subr.mxu0 0.0
    %396 = vmatpush1.msra.mxu0 0.0
    %397 = vmatprep.mubr.f32.mxu0 0.0
    %398 = vmatmul.mubr.f32.gmra.mrb[0].mxu0 %v328
    %v399 = vpop.f32.mrb[0].mxu0
    %v400 = vadd.f32 %v319, %v399
    %v401 = vpop.f32.mrb[0].mxu0
    %402 = vmatprep.mubr.f32.mxu0 0.0
    %403 = vmatmul.mubr.f32.gmra.mrb[0].mxu0 %v331
    %v404 = vpop.f32.mrb[0].mxu0
    %v405 = vadd.f32 %v324, %v404
    %v406 = vpop.f32.mrb[0].mxu0
    %407 = vdwg.mxu0
    %v408 = vld [vmem:[%s8] sm:$0x1]
    %v410 = vlaneseq
    %v411 = vshrl.u32 %v410, 7
    %v412 = vsub.s32 0, %v411
    %v413 = vrot.slane %v408, %v412
    %v415 = vadd.f32 %v400, %v413
    %v416 = vadd.f32 %v405, %v413
    %v417 = vxor.u32 %v415, 2147483648
    %v418 = vxor.u32 %v416, 2147483648
    %v419 = vmul.f32 %v417, 1.442695
    %v420 = vpow.pop %v419
    %v421 = vmul.f32 %v418, 1.442695
    %v422 = vpow.pop %v421
    %v423 = vadd.f32 %v420, 1.0
    %v424 = vadd.f32 %v422, 1.0
    %v425 = vrcp.pop %v423
    %v426 = vmul.f32 1.0, %v425
    %v427 = vrcp.pop %v424
    %v428 = vmul.f32 1.0, %v427
    %v429 = vld [vmem:[%s9] sm:$0xff]
    %v430 = vld [vmem:[%s9 + $0x8] sm:$0xff]
    %v431 = vld [vmem:[%s9 + $0x10] sm:$0xff]
    %v432 = vld [vmem:[%s9 + $0x18] sm:$0xff]
    %v433 = vld [vmem:[%s11] sm:$0x1]
    %v435 = vlaneseq
    %v436 = vshrl.u32 %v435, 7
    %v437 = vsub.s32 0, %v436
    %v438 = vrot.slane %v433, %v437
    %440 = vmatprep.subr.mxu0 0.0
    %441 = vmatpush1.msra.mxu0 %v429
    %442 = vmatprep.subr.mxu0 0.0
    %443 = vmatpush1.msra.mxu0 %v430
    %444 = vmatprep.subr.mxu0 0.0
    %445 = vmatpush1.msra.mxu0 %v431
    %446 = vmatprep.subr.mxu0 0.0
    %447 = vmatpush1.msra.mxu0 %v432
    %448 = vmatprep.subr.mxu0 0.0
    %449 = vmatpush1.msra.mxu0 0.0
    %450 = vmatprep.subr.mxu0 0.0
    %451 = vmatpush1.msra.mxu0 0.0
    %452 = vmatprep.subr.mxu0 0.0
    %453 = vmatpush1.msra.mxu0 0.0
    %454 = vmatprep.subr.mxu0 0.0
    %455 = vmatpush1.msra.mxu0 0.0
    %456 = vmatprep.subr.mxu0 0.0
    %457 = vmatpush1.msra.mxu0 0.0
    %458 = vmatprep.subr.mxu0 0.0
    %459 = vmatpush1.msra.mxu0 0.0
    %460 = vmatprep.subr.mxu0 0.0
    %461 = vmatpush1.msra.mxu0 0.0
    %462 = vmatprep.subr.mxu0 0.0
    %463 = vmatpush1.msra.mxu0 0.0
    %464 = vmatprep.subr.mxu0 0.0
    %465 = vmatpush1.msra.mxu0 0.0
    %466 = vmatprep.subr.mxu0 0.0
    %467 = vmatpush1.msra.mxu0 0.0
    %468 = vmatprep.subr.mxu0 0.0
    %469 = vmatpush1.msra.mxu0 0.0
    %470 = vmatprep.subr.mxu0 0.0
    %471 = vmatpush1.msra.mxu0 0.0
    %472 = vmatprep.subr.mxu0 0.0
    %473 = vmatpush1.msra.mxu0 0.0
    %474 = vmatprep.subr.mxu0 0.0
    %475 = vmatpush1.msra.mxu0 0.0
    %476 = vmatprep.subr.mxu0 0.0
    %477 = vmatpush1.msra.mxu0 0.0
    %478 = vmatprep.subr.mxu0 0.0
    %479 = vmatpush1.msra.mxu0 0.0
    %480 = vmatprep.subr.mxu0 0.0
    %481 = vmatpush1.msra.mxu0 0.0
    %482 = vmatprep.subr.mxu0 0.0
    %483 = vmatpush1.msra.mxu0 0.0
    %484 = vmatprep.subr.mxu0 0.0
    %485 = vmatpush1.msra.mxu0 0.0
    %486 = vmatprep.subr.mxu0 0.0
    %487 = vmatpush1.msra.mxu0 0.0
    %488 = vmatprep.subr.mxu0 0.0
    %489 = vmatpush1.msra.mxu0 0.0
    %490 = vmatprep.subr.mxu0 0.0
    %491 = vmatpush1.msra.mxu0 0.0
    %492 = vmatprep.subr.mxu0 0.0
    %493 = vmatpush1.msra.mxu0 0.0
    %494 = vmatprep.subr.mxu0 0.0
    %495 = vmatpush1.msra.mxu0 0.0
    %496 = vmatprep.subr.mxu0 0.0
    %497 = vmatpush1.msra.mxu0 0.0
    %498 = vmatprep.subr.mxu0 0.0
    %499 = vmatpush1.msra.mxu0 0.0
    %500 = vmatprep.subr.mxu0 0.0
    %501 = vmatpush1.msra.mxu0 0.0
    %502 = vmatprep.subr.mxu0 0.0
    %503 = vmatpush1.msra.mxu0 0.0
    %504 = vmatprep.mubr.f32.mxu0 0.0
    %505 = vmatmul.mubr.f32.gmra.mrb[0].mxu0 %v328
    %v506 = vpop.f32.mrb[0].mxu0
    %v507 = vadd.f32 %v438, %v506
    %v508 = vpop.f32.mrb[0].mxu0
    %509 = vmatprep.mubr.f32.mxu0 0.0
    %510 = vmatmul.mubr.f32.gmra.mrb[0].mxu0 %v331
    %v511 = vpop.f32.mrb[0].mxu0
    %v512 = vadd.f32 %v438, %v511
    %v513 = vpop.f32.mrb[0].mxu0
    %514 = vdwg.mxu0
    %v515 = vcombine.high %v426, 0.0
    %v517 = vunpack.c.l.s4 1983009808
    %v518 = vunpack.c.0.s8 %v517
    %v519 = vlaneseq
    %v520 = vshrl.u32 %v519, 7
    %v521 = vsub.s32 %v518, %v520
    %v522 = vrot.slane %v426, %v521
    %v524 = vunpack.c.l.s4 1983009808
    %v525 = vunpack.c.0.s8 %v524
    %v526 = vlaneseq
    %v527 = vshrl.u32 %v526, 7
    %v528 = vsub.s32 %v525, %v527
    %v529 = vrot.slane %v515, %v528
    %v530 = vcombine.high %v428, 0.0
    %v532 = vunpack.c.l.s4 1983009808
    %v533 = vunpack.c.0.s8 %v532
    %v534 = vlaneseq
    %v535 = vshrl.u32 %v534, 7
    %v536 = vsub.s32 %v533, %v535
    %v537 = vrot.slane %v428, %v536
    %v539 = vunpack.c.l.s4 1983009808
    %v540 = vunpack.c.0.s8 %v539
    %v541 = vlaneseq
    %v542 = vshrl.u32 %v541, 7
    %v543 = vsub.s32 %v540, %v542
    %v544 = vrot.slane %v530, %v543
    %v545 = vcombine.low %v522, %v537
    %v546 = vcombine.high %v522, %v537
    %v548 = vunpack.c.l.s4 1934713408
    %v549 = vunpack.c.0.s8 %v548
    %v550 = vlaneseq
    %v551 = vshrl.u32 %v550, 7
    %v552 = vsub.s32 %v549, %v551
    %v553 = vrot.slane %v545, %v552
    %v555 = vunpack.c.l.s4 1934713408
    %v556 = vunpack.c.0.s8 %v555
    %v557 = vlaneseq
    %v558 = vshrl.u32 %v557, 7
    %v559 = vsub.s32 %v556, %v558
    %v560 = vrot.slane %v546, %v559
    %v561 = vcombine.low %v529, %v544
    %v562 = vcombine.high %v529, %v544
    %v564 = vunpack.c.l.s4 1934713408
    %v565 = vunpack.c.0.s8 %v564
    %v566 = vlaneseq
    %v567 = vshrl.u32 %v566, 7
    %v568 = vsub.s32 %v565, %v567
    %v569 = vrot.slane %v561, %v568
    %v571 = vunpack.c.l.s4 1934713408
    %v572 = vunpack.c.0.s8 %v571
    %v573 = vlaneseq
    %v574 = vshrl.u32 %v573, 7
    %v575 = vsub.s32 %v572, %v574
    %v576 = vrot.slane %v562, %v575
    %v577 = vcombine.high %v553, 0.0
    %v578 = vcombine.high %v560, 0.0
    %v579 = vcombine.high %v569, 0.0
    %v580 = vcombine.high %v576, 0.0
    %581 = vst [vmem:[#allocation3] sm:$0x3] %v553
    %582 = vst [vmem:[#allocation3 + $0x2] sm:$0x3] %v577
    %583 = vst [vmem:[#allocation3 + $0x4] sm:$0x3] %v560
    %584 = vst [vmem:[#allocation3 + $0x6] sm:$0x3] %v578
    %585 = vst [vmem:[#allocation3 + $0x8] sm:$0x3] %v569
    %586 = vst [vmem:[#allocation3 + $0xa] sm:$0x3] %v579
    %587 = vst [vmem:[#allocation3 + $0xc] sm:$0x3] %v576
    %588 = vst [vmem:[#allocation3 + $0xe] sm:$0x3] %v580
    %v589 = vcombine.high %v224, 0.0
    %v591 = vunpack.c.l.s4 1983009808
    %v592 = vunpack.c.0.s8 %v591
    %v593 = vlaneseq
    %v594 = vshrl.u32 %v593, 7
    %v595 = vsub.s32 %v592, %v594
    %v596 = vrot.slane %v224, %v595
    %v598 = vunpack.c.l.s4 1983009808
    %v599 = vunpack.c.0.s8 %v598
    %v600 = vlaneseq
    %v601 = vshrl.u32 %v600, 7
    %v602 = vsub.s32 %v599, %v601
    %v603 = vrot.slane %v589, %v602
    %v604 = vcombine.high %v229, 0.0
    %v606 = vunpack.c.l.s4 1983009808
    %v607 = vunpack.c.0.s8 %v606
    %v608 = vlaneseq
    %v609 = vshrl.u32 %v608, 7
    %v610 = vsub.s32 %v607, %v609
    %v611 = vrot.slane %v229, %v610
    %v613 = vunpack.c.l.s4 1983009808
    %v614 = vunpack.c.0.s8 %v613
    %v615 = vlaneseq
    %v616 = vshrl.u32 %v615, 7
    %v617 = vsub.s32 %v614, %v616
    %v618 = vrot.slane %v604, %v617
    %v619 = vcombine.low %v596, %v611
    %v620 = vcombine.high %v596, %v611
    %v622 = vunpack.c.l.s4 1934713408
    %v623 = vunpack.c.0.s8 %v622
    %v624 = vlaneseq
    %v625 = vshrl.u32 %v624, 7
    %v626 = vsub.s32 %v623, %v625
    %v627 = vrot.slane %v619, %v626
    %v629 = vunpack.c.l.s4 1934713408
    %v630 = vunpack.c.0.s8 %v629
    %v631 = vlaneseq
    %v632 = vshrl.u32 %v631, 7
    %v633 = vsub.s32 %v630, %v632
    %v634 = vrot.slane %v620, %v633
    %v635 = vcombine.low %v603, %v618
    %v636 = vcombine.high %v603, %v618
    %v638 = vunpack.c.l.s4 1934713408
    %v639 = vunpack.c.0.s8 %v638
    %v640 = vlaneseq
    %v641 = vshrl.u32 %v640, 7
    %v642 = vsub.s32 %v639, %v641
    %v643 = vrot.slane %v635, %v642
    %v645 = vunpack.c.l.s4 1934713408
    %v646 = vunpack.c.0.s8 %v645
    %v647 = vlaneseq
    %v648 = vshrl.u32 %v647, 7
    %v649 = vsub.s32 %v646, %v648
    %v650 = vrot.slane %v636, %v649
    %v651 = vcombine.high %v627, 0.0
    %v652 = vcombine.high %v634, 0.0
    %v653 = vcombine.high %v643, 0.0
    %v654 = vcombine.high %v650, 0.0
    %655 = vst [vmem:[#allocation4] sm:$0x3] %v627
    %656 = vst [vmem:[#allocation4 + $0x2] sm:$0x3] %v651
    %657 = vst [vmem:[#allocation4 + $0x4] sm:$0x3] %v634
    %658 = vst [vmem:[#allocation4 + $0x6] sm:$0x3] %v652
    %659 = vst [vmem:[#allocation4 + $0x8] sm:$0x3] %v643
    %660 = vst [vmem:[#allocation4 + $0xa] sm:$0x3] %v653
    %661 = vst [vmem:[#allocation4 + $0xc] sm:$0x3] %v650
    %662 = vst [vmem:[#allocation4 + $0xe] sm:$0x3] %v654
    %v663 = vld [vmem:[#allocation2] sm:$0x3]
    %v664 = vld [vmem:[#allocation3] sm:$0x3]
    %v665 = vld [vmem:[#allocation4] sm:$0x3]
    %v666 = vsub.f32 %v663, %v665
    %v667 = vmul.f32 %v664, %v666
    %v668 = vadd.f32 %v665, %v667
    %669 = vst [vmem:[#allocation5] sm:$0x3] %v668
    %s670 = scalar_lea.vmem [#allocation3], 2
    %v671 = vld [vmem:[%s670] sm:$0x3]
    %s672 = scalar_lea.vmem [#allocation4], 2
    %v673 = vld [vmem:[%s672] sm:$0x3]
    %v674 = vsub.f32 %v668, %v673
    %v675 = vmul.f32 %v671, %v674
    %v676 = vadd.f32 %v673, %v675
    %s677 = scalar_lea.vmem [#allocation5], 2
    %678 = vst [vmem:[%s677] sm:$0x3] %v676
    %s679 = scalar_lea.vmem [#allocation3], 4
    %v680 = vld [vmem:[%s679] sm:$0x3]
    %s681 = scalar_lea.vmem [#allocation4], 4
    %v682 = vld [vmem:[%s681] sm:$0x3]
    %v683 = vsub.f32 %v676, %v682
    %v684 = vmul.f32 %v680, %v683
    %v685 = vadd.f32 %v682, %v684
    %s686 = scalar_lea.vmem [#allocation5], 4
    %687 = vst [vmem:[%s686] sm:$0x3] %v685
    %s688 = scalar_lea.vmem [#allocation3], 6
    %v689 = vld [vmem:[%s688] sm:$0x3]
    %s690 = scalar_lea.vmem [#allocation4], 6
    %v691 = vld [vmem:[%s690] sm:$0x3]
    %v692 = vsub.f32 %v685, %v691
    %v693 = vmul.f32 %v689, %v692
    %v694 = vadd.f32 %v691, %v693
    %s695 = scalar_lea.vmem [#allocation5], 6
    %696 = vst [vmem:[%s695] sm:$0x3] %v694
    %s697 = scalar_lea.vmem [#allocation3], 8
    %v698 = vld [vmem:[%s697] sm:$0x3]
    %s699 = scalar_lea.vmem [#allocation4], 8
    %v700 = vld [vmem:[%s699] sm:$0x3]
    %v701 = vsub.f32 %v694, %v700
    %v702 = vmul.f32 %v698, %v701
    %v703 = vadd.f32 %v700, %v702
    %s704 = scalar_lea.vmem [#allocation5], 8
    %705 = vst [vmem:[%s704] sm:$0x3] %v703
    %s706 = scalar_lea.vmem [#allocation3], 10
    %v707 = vld [vmem:[%s706] sm:$0x3]
    %s708 = scalar_lea.vmem [#allocation4], 10
    %v709 = vld [vmem:[%s708] sm:$0x3]
    %v710 = vsub.f32 %v703, %v709
    %v711 = vmul.f32 %v707, %v710
    %v712 = vadd.f32 %v709, %v711
    %s713 = scalar_lea.vmem [#allocation5], 10
    %714 = vst [vmem:[%s713] sm:$0x3] %v712
    %s715 = scalar_lea.vmem [#allocation3], 12
    %v716 = vld [vmem:[%s715] sm:$0x3]
    %s717 = scalar_lea.vmem [#allocation4], 12
    %v718 = vld [vmem:[%s717] sm:$0x3]
    %v719 = vsub.f32 %v712, %v718
    %v720 = vmul.f32 %v716, %v719
    %v721 = vadd.f32 %v718, %v720
    %s722 = scalar_lea.vmem [#allocation5], 12
    %723 = vst [vmem:[%s722] sm:$0x3] %v721
    %s724 = scalar_lea.vmem [#allocation3], 14
    %v725 = vld [vmem:[%s724] sm:$0x3]
    %s726 = scalar_lea.vmem [#allocation4], 14
    %v727 = vld [vmem:[%s726] sm:$0x3]
    %v728 = vsub.f32 %v721, %v727
    %v729 = vmul.f32 %v725, %v728
    %v730 = vadd.f32 %v727, %v729
    %s731 = scalar_lea.vmem [#allocation5], 14
    %732 = vst [vmem:[%s731] sm:$0x3] %v730
    %733 = vst [vmem:[#allocation2] sm:$0x3] %v730
    %v734 = vld [vmem:[#allocation5] sm:$0x3]
    %v735 = vld [vmem:[#allocation5 + $0x2] sm:$0x3]
    %v736 = vld [vmem:[#allocation5 + $0x4] sm:$0x3]
    %v737 = vld [vmem:[#allocation5 + $0x6] sm:$0x3]
    %v738 = vld [vmem:[#allocation5 + $0x8] sm:$0x3]
    %v739 = vld [vmem:[#allocation5 + $0xa] sm:$0x3]
    %v740 = vld [vmem:[#allocation5 + $0xc] sm:$0x3]
    %v741 = vld [vmem:[#allocation5 + $0xe] sm:$0x3]
    %v742 = vcombine.low %v734, %v736
    %v744 = vunpack.c.l.s4 1983009808
    %v745 = vunpack.c.0.s8 %v744
    %v746 = vlaneseq
    %v747 = vshrl.u32 %v746, 7
    %v748 = vsub.s32 %v745, %v747
    %v749 = vrot.slane %v742, %v748
    %v750 = vcombine.low %v735, %v737
    %v752 = vunpack.c.l.s4 1983009808
    %v753 = vunpack.c.0.s8 %v752
    %v754 = vlaneseq
    %v755 = vshrl.u32 %v754, 7
    %v756 = vsub.s32 %v753, %v755
    %v757 = vrot.slane %v750, %v756
    %v758 = vcombine.low %v738, %v740
    %v760 = vunpack.c.l.s4 1983009808
    %v761 = vunpack.c.0.s8 %v760
    %v762 = vlaneseq
    %v763 = vshrl.u32 %v762, 7
    %v764 = vsub.s32 %v761, %v763
    %v765 = vrot.slane %v758, %v764
    %v766 = vcombine.low %v739, %v741
    %v768 = vunpack.c.l.s4 1983009808
    %v769 = vunpack.c.0.s8 %v768
    %v770 = vlaneseq
    %v771 = vshrl.u32 %v770, 7
    %v772 = vsub.s32 %v769, %v771
    %v773 = vrot.slane %v766, %v772
    %v774 = vcombine.low %v749, %v757
    %v776 = vunpack.c.l.s4 1934713408
    %v777 = vunpack.c.0.s8 %v776
    %v778 = vlaneseq
    %v779 = vshrl.u32 %v778, 7
    %v780 = vsub.s32 %v777, %v779
    %v781 = vrot.slane %v774, %v780
    %v782 = vcombine.low %v765, %v773
    %v784 = vunpack.c.l.s4 1934713408
    %v785 = vunpack.c.0.s8 %v784
    %v786 = vlaneseq
    %v787 = vshrl.u32 %v786, 7
    %v788 = vsub.s32 %v785, %v787
    %v789 = vrot.slane %v782, %v788
    %v790 = vcombine.low %v781, %v789
    %v791 = vcombine.high %v781, %v789
    %v792 = vld [vmem:[%s10] sm:$0xff]
    %v793 = vld [vmem:[%s10 + $0x8] sm:$0xff]
    %v794 = vld [vmem:[%s10 + $0x10] sm:$0xff]
    %v795 = vld [vmem:[%s10 + $0x18] sm:$0xff]
    %v796 = vld [vmem:[%s10 + $0x20] sm:$0xff]
    %v797 = vld [vmem:[%s10 + $0x28] sm:$0xff]
    %v798 = vld [vmem:[%s10 + $0x30] sm:$0xff]
    %v799 = vld [vmem:[%s10 + $0x38] sm:$0xff]
    %v800 = vld [vmem:[%s10 + $0x40] sm:$0xff]
    %v801 = vld [vmem:[%s10 + $0x48] sm:$0xff]
    %v802 = vld [vmem:[%s10 + $0x50] sm:$0xff]
    %v803 = vld [vmem:[%s10 + $0x58] sm:$0xff]
    %v804 = vld [vmem:[%s10 + $0x60] sm:$0xff]
    %v805 = vld [vmem:[%s10 + $0x68] sm:$0xff]
    %v806 = vld [vmem:[%s10 + $0x70] sm:$0xff]
    %v807 = vld [vmem:[%s10 + $0x78] sm:$0xff]
    %808 = vmatprep.subr.mxu0 0.0
    %809 = vmatpush1.msra.mxu0 %v792
    %810 = vmatprep.subr.mxu0 0.0
    %811 = vmatpush1.msra.mxu0 %v793
    %812 = vmatprep.subr.mxu0 0.0
    %813 = vmatpush1.msra.mxu0 %v794
    %814 = vmatprep.subr.mxu0 0.0
    %815 = vmatpush1.msra.mxu0 %v795
    %816 = vmatprep.subr.mxu0 0.0
    %817 = vmatpush1.msra.mxu0 %v796
    %818 = vmatprep.subr.mxu0 0.0
    %819 = vmatpush1.msra.mxu0 %v797
    %820 = vmatprep.subr.mxu0 0.0
    %821 = vmatpush1.msra.mxu0 %v798
    %822 = vmatprep.subr.mxu0 0.0
    %823 = vmatpush1.msra.mxu0 %v799
    %824 = vmatprep.subr.mxu0 0.0
    %825 = vmatpush1.msra.mxu0 %v800
    %826 = vmatprep.subr.mxu0 0.0
    %827 = vmatpush1.msra.mxu0 %v801
    %828 = vmatprep.subr.mxu0 0.0
    %829 = vmatpush1.msra.mxu0 %v802
    %830 = vmatprep.subr.mxu0 0.0
    %831 = vmatpush1.msra.mxu0 %v803
    %832 = vmatprep.subr.mxu0 0.0
    %833 = vmatpush1.msra.mxu0 %v804
    %834 = vmatprep.subr.mxu0 0.0
    %835 = vmatpush1.msra.mxu0 %v805
    %836 = vmatprep.subr.mxu0 0.0
    %837 = vmatpush1.msra.mxu0 %v806
    %838 = vmatprep.subr.mxu0 0.0
    %839 = vmatpush1.msra.mxu0 %v807
    %840 = vmatprep.subr.mxu0 0.0
    %841 = vmatpush1.msra.mxu0 0.0
    %842 = vmatprep.subr.mxu0 0.0
    %843 = vmatpush1.msra.mxu0 0.0
    %844 = vmatprep.subr.mxu0 0.0
    %845 = vmatpush1.msra.mxu0 0.0
    %846 = vmatprep.subr.mxu0 0.0
    %847 = vmatpush1.msra.mxu0 0.0
    %848 = vmatprep.subr.mxu0 0.0
    %849 = vmatpush1.msra.mxu0 0.0
    %850 = vmatprep.subr.mxu0 0.0
    %851 = vmatpush1.msra.mxu0 0.0
    %852 = vmatprep.subr.mxu0 0.0
    %853 = vmatpush1.msra.mxu0 0.0
    %854 = vmatprep.subr.mxu0 0.0
    %855 = vmatpush1.msra.mxu0 0.0
    %856 = vmatprep.subr.mxu0 0.0
    %857 = vmatpush1.msra.mxu0 0.0
    %858 = vmatprep.subr.mxu0 0.0
    %859 = vmatpush1.msra.mxu0 0.0
    %860 = vmatprep.subr.mxu0 0.0
    %861 = vmatpush1.msra.mxu0 0.0
    %862 = vmatprep.subr.mxu0 0.0
    %863 = vmatpush1.msra.mxu0 0.0
    %864 = vmatprep.subr.mxu0 0.0
    %865 = vmatpush1.msra.mxu0 0.0
    %866 = vmatprep.subr.mxu0 0.0
    %867 = vmatpush1.msra.mxu0 0.0
    %868 = vmatprep.subr.mxu0 0.0
    %869 = vmatpush1.msra.mxu0 0.0
    %870 = vmatprep.subr.mxu0 0.0
    %871 = vmatpush1.msra.mxu0 0.0
    %872 = vmatprep.mubr.f32.mxu0 0.0
    %873 = vmatmul.mubr.f32.gmra.mrb[0].mxu0 %v790
    %v874 = vpop.f32.mrb[0].mxu0
    %v875 = vadd.f32 0.0, %v874
    %v876 = vpop.f32.mrb[0].mxu0
    %877 = vmatprep.mubr.f32.mxu0 0.0
    %878 = vmatmul.mubr.f32.gmra.mrb[0].mxu0 %v791
    %v879 = vpop.f32.mrb[0].mxu0
    %v880 = vadd.f32 0.0, %v879
    %v881 = vpop.f32.mrb[0].mxu0
    %882 = vdwg.mxu0
    %v883 = vadd.f32 %v507, %v875
    %v884 = vadd.f32 %v512, %v880
    %885 = vst.msk [vmem:[#allocation6] sm:$0xff] %vm64, %v883
    %886 = vst.msk [vmem:[#allocation6 + $0x8] sm:$0xff] %vm64, %v884
    // Predicated region
    $region54: #{thunder_core_forward.1} parent=1 // pred_check
      %p887 = pneg %p45
    $region55: #{thunder_core_forward.1} parent=1 // pred_check_branch
      %889 = sbr.rel (%p887) target = $region57
    $region56: #{thunder_core_forward.1} parent=1 // pred_region
      %890 = vst [vmem:[#allocation8] sm:$0x3] %v730
    $region57: #{thunder_core_forward.1} parent=1 // pred_fallthru
      _
    // Predicated region
    $region58: #{thunder_core_forward.1} parent=1 // pred_check
      _
    $region59: #{thunder_core_forward.1} parent=1 // pred_check_branch
      %892 = sbr.rel (0) target = $region61
    $region60: #{thunder_core_forward.1} parent=1 // pred_region
      %s894 = ssub.s32 256, 256
      %895 = vsyncadd [#allocation7], %s894
      %s896 = sshll.u32 [#allocation6], 4
      %s897 = int_to_ptr.vmem [resolvable:$true] %s896
      %902 = dma.vmem_to_hbm [thread:$0]  %s897, 256, %s12, [#allocation7], 128, 128, 8
    $region61: #{thunder_core_forward.1} parent=1 // pred_fallthru
      _
    // Predicated region
    $region62: #{thunder_core_forward.1} parent=1 // pred_check
      _
    $region63: #{thunder_core_forward.1} parent=1 // pred_check_branch
      %904 = sbr.rel (0) target = $region65
    $region64: #{thunder_core_forward.1} parent=1 // pred_region
      %s906 = ssub.s32 32, 32
      %907 = vsyncadd [#allocation9], %s906
      %s909 = sshll.u32 [#allocation8], 4
      %s910 = int_to_ptr.vmem [resolvable:$true] %s909
      %912 = dma.vmem_to_hbm [thread:$0]  %s910, 32, %s13, [#allocation9]
    $region65: #{thunder_core_forward.1} parent=1 // pred_fallthru
      _
    // Predicated region
    $region66: #{thunder_core_forward.1} parent=1 // pred_check
      _
    $region67: #{thunder_core_forward.1} parent=1 // pred_check_branch
      %914 = sbr.rel (0) target = $region69
    $region68: #{thunder_core_forward.1} parent=1 // pred_region
      %915 = dma.done [#allocation7], 256
    $region69: #{thunder_core_forward.1} parent=1 // pred_fallthru
      _
    // Predicated region
    $region70: #{thunder_core_forward.1} parent=1 // pred_check
      _
    $region71: #{thunder_core_forward.1} parent=1 // pred_check_branch
      %917 = sbr.rel (0) target = $region73
    $region72: #{thunder_core_forward.1} parent=1 // pred_region
      %918 = dma.done [#allocation9], 32
    $region73: #{thunder_core_forward.1} parent=1 // pred_fallthru
      _
    %919 = vsyncpa [#allocation7], 1
    %920 = vsyncpa [#allocation9], 1

</llo_original>
